<compile_context>
chip_gen: v7x
topology: tpu7x:2x2x1
jax: 0.10.0
libtpu: 0.0.40
codegen_flags: <defaults>
</compile_context>

<pallas_src>
import math

import numpy as np
import jax
import jax.numpy as jnp
from jax import lax
from jax.experimental import pallas as pl
from jax.experimental.pallas import tpu as pltpu

# ----------------------------- tiny Llama config ----------------------------
SEQ = 8            # sequence length (= #tokens of the demo text)
DIM = 128          # hidden size
N_HEADS = 4
N_KV_HEADS = 2     # grouped-query attention
GROUP = N_HEADS // N_KV_HEADS      # 2
HEAD_DIM = DIM // N_HEADS          # 32
HALF = HEAD_DIM // 2               # 16
KV_DIM = N_KV_HEADS * HEAD_DIM     # 64
QKV_W = DIM + 2 * KV_DIM           # 256  fused q|k|v projection width
ROPE_W = DIM + KV_DIM              # 192  lanes that receive RoPE (q|k)
INTER = 256        # MLP intermediate size
GU_W = 2 * INTER                   # 512  fused gate|up width
N_LAYERS = 2
VOCAB = 32
RMS_EPS = 1e-5
ROPE_THETA = 500000.0              # Llama-3.1 base theta (no rope scaling)
DTYPE = jnp.bfloat16               # model_kwargs={'torch_dtype': torch.bfloat16}
SCALE = 1.0 / math.sqrt(HEAD_DIM)  # folded into the q columns of wqkv at init
MASK_NEG = -1e30


# ------------------------------ Pallas kernel --------------------------------
def _rmsnorm(x_f32, w_bf16):
    """HF-style RMSNorm: f32 math, bf16 result (feeds the MXU directly)."""
    var = jnp.mean(x_f32 * x_f32, axis=-1, keepdims=True)
    return (x_f32 * lax.rsqrt(var + RMS_EPS)
            * w_bf16.astype(jnp.float32)).astype(DTYPE)


def llama_stack_kernel(h0_ref, wqkv_ref, wo_ref, wgu_ref, wd_ref,
                       ln1_ref, ln2_ref, cos_ref, sin_lo_ref, sin_hi_ref,
                       mask_ref, cap_ref):
    """Single invocation; both decoder layers fully unrolled.  Everything
    (weights, tables, captures) lives whole in VMEM."""
    cos_t = cos_ref[...]           # (SEQ, QKV_W)  f32
    sin_lo = sin_lo_ref[...]       # (SEQ, QKV_W)  f32
    sin_hi = sin_hi_ref[...]       # (SEQ, QKV_W)  f32
    mask = mask_ref[...]           # (GROUP*SEQ, SEQ) additive causal bias, f32

    h_bf = h0_ref[...]             # (SEQ, DIM) bf16 hidden state

    for l in range(N_LAYERS):      # static unroll
        x = h_bf.astype(jnp.float32)

        # ----------------------- fused QKV projection -----------------------
        h1 = _rmsnorm(x, ln1_ref[l])
        qkv = jnp.dot(h1, wqkv_ref[l],
                      preferred_element_type=jnp.float32)   # (SEQ, 256) [q|k|v]

        # RoPE (HF rotate_half) on the whole lane-dense slab via two XLU rolls
        # and precomputed cos / masked +-sin tables (identity over the v lanes).
        qkv = (qkv * cos_t
               + pltpu.roll(qkv, shift=HALF, axis=1) * sin_hi
               + pltpu.roll(qkv, shift=QKV_W - HALF, axis=1) * sin_lo)
        qkv = qkv.astype(DTYPE)

        # -------------------- GQA attention, batched per kv group -----------
        ctx_parts = []
        for g in range(N_KV_HEADS):            # static 2-iteration loop
            q_lo = qkv[:, (g * GROUP) * HEAD_DIM:(g * GROUP + 1) * HEAD_DIM]
            q_hi = qkv[:, (g * GROUP + 1) * HEAD_DIM:(g * GROUP + 2) * HEAD_DIM]
            qg = jnp.concatenate([q_lo, q_hi], axis=0)        # (16, 32) rows=(m,s)
            kg = qkv[:, DIM + g * HEAD_DIM:DIM + (g + 1) * HEAD_DIM]      # (8, 32)
            vg = qkv[:, ROPE_W + g * HEAD_DIM:ROPE_W + (g + 1) * HEAD_DIM]

            s = jnp.einsum('qd,kd->qk', qg, kg,
                           preferred_element_type=jnp.float32)            # (16, 8)
            p = jnp.exp(s + mask)              # no row-max: bounded logits,
            p = p * pl.reciprocal(             # -1e30 mask underflows to 0
                jnp.sum(p, axis=-1, keepdims=True), approx=False)
            cg = jnp.dot(p.astype(DTYPE), vg,
                         preferred_element_type=jnp.float32)              # (16, 32)
            # back to lane layout [head 2g | head 2g+1]
            ctx_parts.append(jnp.concatenate([cg[0:SEQ], cg[SEQ:2 * SEQ]], axis=1))

        ctx = jnp.concatenate(ctx_parts, axis=1).astype(DTYPE)            # (8, 128)
        # single K=128 output projection (wo kept flat, head-major rows)
        attn_bf = jnp.dot(ctx, wo_ref[l],
                          preferred_element_type=jnp.float32).astype(DTYPE)

        # ------------------------ residual + SwiGLU MLP ----------------------
        h2_bf = h_bf + attn_bf                                # bf16 residual (HF)
        h3 = _rmsnorm(h2_bf.astype(jnp.float32), ln2_ref[l])
        gu = jnp.dot(h3, wgu_ref[l],
                     preferred_element_type=jnp.float32)      # (SEQ, 512) [gate|up]
        gate = gu[:, :INTER]
        up = gu[:, INTER:]
        act = (gate * jax.nn.sigmoid(gate) * up).astype(DTYPE)  # SiLU via EUP
        mlp_bf = jnp.dot(act, wd_ref[l],
                         preferred_element_type=jnp.float32).astype(DTYPE)
        block_bf = h2_bf + mlp_bf                             # bf16 residual (HF)

        # coalesced lane-dense capture: [attn | mlp | block], one store stream
        cap_ref[l] = jnp.concatenate([attn_bf, mlp_bf, block_bf], axis=-1)
        h_bf = block_bf                                       # feed next layer


@jax.jit
def llama_forward_stack(h0, params, cos_t, sin_lo, sin_hi, mask_rep):
    """h0: (SEQ, DIM) bf16 -> captures (N_LAYERS, SEQ, 3*DIM) bf16."""
    wqkv, wo, wgu, wd, ln1, ln2 = params
    return pl.pallas_call(
        llama_stack_kernel,
        out_shape=jax.ShapeDtypeStruct((N_LAYERS, SEQ, 3 * DIM), DTYPE),
    )(h0, wqkv, wo, wgu, wd, ln1, ln2, cos_t, sin_lo, sin_hi, mask_rep)


# ------------------------------ parameter setup -------------------------------
def init_stacked_params(keys):
    """Per-layer synthetic weights, fused (qkv / gate|up) and stacked on layer."""
    wqkv_l, wo_l, wgu_l, wd_l, ln1_l, ln2_l = [], [], [], [], [], []
    s = 0.02
    for k in keys:
        ks = jax.random.split(k, 9)
        wq = jax.random.normal(ks[0], (DIM, DIM), jnp.float32) * s
        wk = jax.random.normal(ks[1], (DIM, KV_DIM), jnp.float32) * s
        wv = jax.random.normal(ks[2], (DIM, KV_DIM), jnp.float32) * s
        wo = jax.random.normal(ks[3], (DIM, DIM), jnp.float32) * s
        wg = jax.random.normal(ks[4], (DIM, INTER), jnp.float32) * s
        wu = jax.random.normal(ks[5], (DIM, INTER), jnp.float32) * s
        wd = jax.random.normal(ks[6], (INTER, DIM), jnp.float32) * s
        ln1 = 1.0 + 0.05 * jax.random.normal(ks[7], (1, DIM), jnp.float32)
        ln2 = 1.0 + 0.05 * jax.random.normal(ks[8], (1, DIM), jnp.float32)
        # fold the 1/sqrt(head_dim) attention scale into the q columns
        wqkv_l.append(jnp.concatenate([wq * SCALE, wk, wv], -1).astype(DTYPE))  # (128,256)
        wo_l.append(wo.astype(DTYPE))                                           # (128,128)
        wgu_l.append(jnp.concatenate([wg, wu], -1).astype(DTYPE))               # (128,512)
        wd_l.append(wd.astype(DTYPE))                                           # (256,128)
        ln1_l.append(ln1.astype(DTYPE))
        ln2_l.append(ln2.astype(DTYPE))
    return (jnp.stack(wqkv_l), jnp.stack(wo_l), jnp.stack(wgu_l),
            jnp.stack(wd_l), jnp.stack(ln1_l), jnp.stack(ln2_l))


def rope_tables_fused(seq, head_dim, theta):
    """cos / masked +-sin tables tiled across the fused q|k|v lane layout,
    plus the per-head cos/sin for the pure-JAX reference."""
    half = head_dim // 2
    inv_freq = 1.0 / (theta ** (jnp.arange(0, head_dim, 2, dtype=jnp.float32)
                                / head_dim))
    pos = jnp.arange(seq, dtype=jnp.float32)
    freqs = jnp.outer(pos, inv_freq)                       # (seq, head_dim/2)
    emb = jnp.concatenate([freqs, freqs], axis=-1)         # HF convention (seq, 32)
    cos_h, sin_h = jnp.cos(emb), jnp.sin(emb)
    d = jnp.arange(head_dim, dtype=jnp.int32)
    lo = (d < half).astype(jnp.float32)                    # first half of each head
    hi = 1.0 - lo
    n_rope_heads = ROPE_W // head_dim                      # q heads + kv heads = 6
    pad = QKV_W - ROPE_W                                   # v lanes = identity
    cos_t = jnp.concatenate(
        [jnp.tile(cos_h, (1, n_rope_heads)), jnp.ones((seq, pad), jnp.float32)], -1)
    sin_lo = jnp.concatenate(
        [jnp.tile(-sin_h * lo, (1, n_rope_heads)), jnp.zeros((seq, pad), jnp.float32)], -1)
    sin_hi = jnp.concatenate(
        [jnp.tile(sin_h * hi, (1, n_rope_heads)), jnp.zeros((seq, pad), jnp.float32)], -1)
    return cos_t, sin_lo, sin_hi, cos_h, sin_h


def causal_bias(seq):
    qi = jnp.arange(seq)[:, None]
    ki = jnp.arange(seq)[None, :]
    return jnp.where(ki <= qi, 0.0, MASK_NEG).astype(jnp.float32)


# ------------------------- pure-JAX reference (validation) -------------------
def llama_forward_reference(h0, params, cos_h, sin_h, mask_base):
    wqkv, wo, wgu, wd, ln1, ln2 = params

    def rms(x_f32, w):
        var = jnp.mean(x_f32 * x_f32, axis=-1, keepdims=True)
        return (x_f32 * lax.rsqrt(var + RMS_EPS) * w.astype(jnp.float32)).astype(DTYPE)

    def rope(x):  # (SEQ, H, HEAD_DIM) f32, HF rotate_half convention
        x1, x2 = x[..., :HALF], x[..., HALF:]
        rot = jnp.concatenate([-x2, x1], axis=-1)
        return x * cos_h[:, None, :] + rot * sin_h[:, None, :]

    h = h0
    attns, mlps, blocks = [], [], []
    for l in range(N_LAYERS):
        x = h.astype(jnp.float32)
        h1 = rms(x, ln1[l])
        qkv = jnp.dot(h1, wqkv[l], preferred_element_type=jnp.float32)
        q = rope(qkv[:, :DIM].reshape(SEQ, N_HEADS, HEAD_DIM)).astype(DTYPE)
        k = rope(qkv[:, DIM:ROPE_W].reshape(SEQ, N_KV_HEADS, HEAD_DIM)).astype(DTYPE)
        v = qkv[:, ROPE_W:].reshape(SEQ, N_KV_HEADS, HEAD_DIM).astype(DTYPE)
        k = jnp.repeat(k, GROUP, axis=1)
        v = jnp.repeat(v, GROUP, axis=1)
        s = jnp.einsum('qhd,khd->hqk', q, k, preferred_element_type=jnp.float32)
        p = jnp.exp(s + mask_base[None])
        p = p / jnp.sum(p, axis=-1, keepdims=True)
        ctx = jnp.einsum('hqk,khd->qhd', p.astype(DTYPE), v,
                         preferred_element_type=jnp.float32)
        ctx = ctx.reshape(SEQ, DIM).astype(DTYPE)
        attn = jnp.dot(ctx, wo[l], preferred_element_type=jnp.float32).astype(DTYPE)
        h2 = h + attn
        h3 = rms(h2.astype(jnp.float32), ln2[l])
        gu = jnp.dot(h3, wgu[l], preferred_element_type=jnp.float32)
        gate, up = gu[:, :INTER], gu[:, INTER:]
        act = (gate * jax.nn.sigmoid(gate) * up).astype(DTYPE)
        mlp = jnp.dot(act, wd[l], preferred_element_type=jnp.float32).astype(DTYPE)
        blk = h2 + mlp
        attns.append(attn); mlps.append(mlp); blocks.append(blk)
        h = blk
    return attns, mlps, blocks


# --------------------------------- module ------------------------------------
class LlamaPallas:
    """Mirrors ncut_pytorch Llama.forward(): returns per-layer attn/mlp/block."""

    def __init__(self, key):
        kemb, *klayers = jax.random.split(key, N_LAYERS + 1)
        self.embed = (jax.random.normal(kemb, (VOCAB, DIM), jnp.float32)
                      * 0.02).astype(DTYPE)
        self.params = init_stacked_params(klayers)
        (self.cos_t, self.sin_lo, self.sin_hi,
         self.cos_h, self.sin_h) = rope_tables_fused(SEQ, HEAD_DIM, ROPE_THETA)
        self.mask_base = causal_bias(SEQ)                      # (SEQ, SEQ)
        self.mask_rep = jnp.tile(self.mask_base, (GROUP, 1))   # (GROUP*SEQ, SEQ)

    def _tokenize(self, text):
        # TODO(synk): real HF tokenizer has no Pallas/JAX equivalent; use a
        # deterministic word-hash tokenizer instead.
        words = text.split()[:SEQ]
        assert len(words) == SEQ, "demo text must have exactly SEQ tokens"
        ids = [sum(ord(c) for c in w) % VOCAB for w in words]
        return jnp.asarray(ids, jnp.int32), words

    def forward(self, text):
        token_ids, token_texts = self._tokenize(text)
        h0 = self.embed[token_ids]                             # (SEQ, DIM) bf16
        caps = llama_forward_stack(h0, self.params, self.cos_t, self.sin_lo,
                                   self.sin_hi, self.mask_rep)
        attn_outputs = [caps[l, :, 0:DIM] for l in range(N_LAYERS)]
        mlp_outputs = [caps[l, :, DIM:2 * DIM] for l in range(N_LAYERS)]
        block_outputs = [caps[l, :, 2 * DIM:3 * DIM] for l in range(N_LAYERS)]
        # TODO(synk): final model norm / lm_head omitted -- the reference module
        # only returns the captured per-layer tensors + token texts.
        return {'attn': attn_outputs, 'mlp': mlp_outputs,
                'block': block_outputs, 'token_texts': token_texts}

    def reference(self, text):
        token_ids, _ = self._tokenize(text)
        h0 = self.embed[token_ids]
        return llama_forward_reference(h0, self.params, self.cos_h, self.sin_h,
                                       self.mask_base)


if __name__ == "__main__":
    key = jax.random.PRNGKey(0)
    model = LlamaPallas(key)
    text = "the quick brown fox jumps over lazy dog"
    out = model.forward(text)
    jax.block_until_ready((out['attn'], out['mlp'], out['block']))

    assert len(out['block']) == N_LAYERS
    assert out['block'][0].shape == (SEQ, DIM)
    assert out['block'][0].dtype == jnp.bfloat16
    assert bool(jnp.isfinite(out['block'][-1].astype(jnp.float32)).all())

    # Numerical check against a pure-JAX/XLA reference: validates the fused
    # RoPE rolls, the GQA group layout and the single-matmul o_proj.
    ref_attn, ref_mlp, ref_block = model.reference(text)
    for l in range(N_LAYERS):
        for got, ref in ((out['attn'][l], ref_attn[l]),
                         (out['mlp'][l], ref_mlp[l]),
                         (out['block'][l], ref_block[l])):
            np.testing.assert_allclose(
                np.asarray(got.astype(jnp.float32)),
                np.asarray(ref.astype(jnp.float32)),
                rtol=3e-2, atol=3e-2)

    print("KERNEL_OK")
</pallas_src>

<mosaic_0001>
module attributes {stable_mosaic.version = 11 : i64} {
  func.func @llama_stack_kernel(%arg0: memref<8x128xbf16, #tpu.memory_space<vmem>>, %arg1: memref<2x128x256xbf16, #tpu.memory_space<vmem>>, %arg2: memref<2x128x128xbf16, #tpu.memory_space<vmem>>, %arg3: memref<2x128x512xbf16, #tpu.memory_space<vmem>>, %arg4: memref<2x256x128xbf16, #tpu.memory_space<vmem>>, %arg5: memref<2x1x128xbf16, #tpu.memory_space<vmem>>, %arg6: memref<2x1x128xbf16, #tpu.memory_space<vmem>>, %arg7: memref<8x256xf32, #tpu.memory_space<vmem>>, %arg8: memref<8x256xf32, #tpu.memory_space<vmem>>, %arg9: memref<8x256xf32, #tpu.memory_space<vmem>>, %arg10: memref<16x8xf32, #tpu.memory_space<vmem>>, %arg11: memref<2x8x384xbf16, #tpu.memory_space<vmem>>) attributes {dimension_semantics = [], scalar_prefetch = 0 : i64, scratch_operands = 0 : i64, tpu.core_type = #tpu.core_type<tc>} {
    %c0 = arith.constant 0 : index
    %c0_0 = arith.constant 0 : index
    %0 = vector.load %arg7[%c0, %c0_0] : memref<8x256xf32, #tpu.memory_space<vmem>>, vector<8x256xf32>
    %c0_1 = arith.constant 0 : index
    %c0_2 = arith.constant 0 : index
    %1 = vector.load %arg8[%c0_1, %c0_2] : memref<8x256xf32, #tpu.memory_space<vmem>>, vector<8x256xf32>
    %c0_3 = arith.constant 0 : index
    %c0_4 = arith.constant 0 : index
    %2 = vector.load %arg9[%c0_3, %c0_4] : memref<8x256xf32, #tpu.memory_space<vmem>>, vector<8x256xf32>
    %c0_5 = arith.constant 0 : index
    %c0_6 = arith.constant 0 : index
    %3 = vector.load %arg10[%c0_5, %c0_6] : memref<16x8xf32, #tpu.memory_space<vmem>>, vector<16x8xf32>
    %c0_7 = arith.constant 0 : index
    %c0_8 = arith.constant 0 : index
    %4 = vector.load %arg0[%c0_7, %c0_8] : memref<8x128xbf16, #tpu.memory_space<vmem>>, vector<8x128xbf16>
    %5 = arith.extf %4 : vector<8x128xbf16> to vector<8x128xf32>
    %c0_9 = arith.constant 0 : index
    %c0_10 = arith.constant 0 : index
    %c0_11 = arith.constant 0 : index
    %6 = vector.load %arg5[%c0_9, %c0_10, %c0_11] : memref<2x1x128xbf16, #tpu.memory_space<vmem>>, vector<1x1x128xbf16>
    %7 = vector.shape_cast %6 : vector<1x1x128xbf16> to vector<1x128xbf16>
    %8 = arith.mulf %5, %5 : vector<8x128xf32>
    %cst = arith.constant dense<0.000000e+00> : vector<8xf32>
    %9 = vector.multi_reduction <add>, %8, %cst [1] : vector<8x128xf32> to vector<8xf32>
    %10 = vector.shape_cast %9 : vector<8xf32> to vector<8x1xf32>
    %cst_12 = arith.constant 1.280000e+02 : f32
    %11 = vector.broadcast %cst_12 : f32 to vector<8x1xf32>
    %12 = arith.divf %10, %11 : vector<8x1xf32>
    %cst_13 = arith.constant 9.99999974E-6 : f32
    %13 = vector.broadcast %cst_13 : f32 to vector<8x1xf32>
    %14 = arith.addf %12, %13 : vector<8x1xf32>
    %15 = math.rsqrt %14 : vector<8x1xf32>
    %16 = vector.broadcast %15 : vector<8x1xf32> to vector<8x128xf32>
    %17 = arith.mulf %5, %16 : vector<8x128xf32>
    %18 = arith.extf %7 : vector<1x128xbf16> to vector<1x128xf32>
    %19 = vector.broadcast %18 : vector<1x128xf32> to vector<8x128xf32>
    %20 = arith.mulf %17, %19 : vector<8x128xf32>
    %21 = arith.truncf %20 : vector<8x128xf32> to vector<8x128xbf16>
    %c0_14 = arith.constant 0 : index
    %c0_15 = arith.constant 0 : index
    %c0_16 = arith.constant 0 : index
    %22 = vector.load %arg1[%c0_14, %c0_15, %c0_16] : memref<2x128x256xbf16, #tpu.memory_space<vmem>>, vector<1x128x256xbf16>
    %23 = vector.shape_cast %22 : vector<1x128x256xbf16> to vector<128x256xbf16>
    %cst_17 = arith.constant dense<0.000000e+00> : vector<8x256xf32>
    %24 = tpu.matmul %21, %23, %cst_17 {dimension_numbers = #tpu.dot_dimension_numbers<[1], [0], [0], [1], [0, 0, 1, 1], [], []>} : vector<8x128xbf16>, vector<128x256xbf16>, vector<8x256xf32> -> vector<8x256xf32>
    %25 = arith.mulf %24, %0 : vector<8x256xf32>
    %c16_i32 = arith.constant 16 : i32
    %26 = tpu.dynamic_rotate %24 by %c16_i32 dim 1 : vector<8x256xf32>, i32 -> vector<8x256xf32>
    %27 = arith.mulf %26, %2 : vector<8x256xf32>
    %28 = arith.addf %25, %27 : vector<8x256xf32>
    %c240_i32 = arith.constant 240 : i32
    %29 = tpu.dynamic_rotate %24 by %c240_i32 dim 1 : vector<8x256xf32>, i32 -> vector<8x256xf32>
    %30 = arith.mulf %29, %1 : vector<8x256xf32>
    %31 = arith.addf %28, %30 : vector<8x256xf32>
    %32 = arith.truncf %31 : vector<8x256xf32> to vector<8x256xbf16>
    %33 = vector.extract_strided_slice %32 {offsets = [0, 0], sizes = [8, 32], strides = [1, 1]} : vector<8x256xbf16> to vector<8x32xbf16>
    %34 = vector.extract_strided_slice %32 {offsets = [0, 32], sizes = [8, 32], strides = [1, 1]} : vector<8x256xbf16> to vector<8x32xbf16>
    %35 = tpu.concatenate %33, %34 in 0 : vector<8x32xbf16>, vector<8x32xbf16> -> vector<16x32xbf16>
    %36 = vector.extract_strided_slice %32 {offsets = [0, 128], sizes = [8, 32], strides = [1, 1]} : vector<8x256xbf16> to vector<8x32xbf16>
    %37 = vector.extract_strided_slice %32 {offsets = [0, 192], sizes = [8, 32], strides = [1, 1]} : vector<8x256xbf16> to vector<8x32xbf16>
    "tpu.trace_start"() <{level = 10 : i32, message = "qd,kd->qk"}> : () -> ()
    %cst_18 = arith.constant dense<0.000000e+00> : vector<16x8xf32>
    %38 = tpu.matmul %35, %36, %cst_18 {dimension_numbers = #tpu.dot_dimension_numbers<[1], [1], [0], [0], [0, 0, 1, 0], [], []>} : vector<16x32xbf16>, vector<8x32xbf16>, vector<16x8xf32> -> vector<16x8xf32>
    "tpu.trace_stop"() : () -> ()
    %39 = arith.addf %38, %3 : vector<16x8xf32>
    %40 = math.exp %39 : vector<16x8xf32>
    %cst_19 = arith.constant dense<0.000000e+00> : vector<16xf32>
    %41 = vector.multi_reduction <add>, %40, %cst_19 [1] : vector<16x8xf32> to vector<16xf32>
    %42 = vector.shape_cast %41 : vector<16xf32> to vector<16x1xf32>
    %43 = tpu.reciprocal %42 : vector<16x1xf32> -> vector<16x1xf32>
    %44 = vector.broadcast %43 : vector<16x1xf32> to vector<16x8xf32>
    %45 = arith.mulf %40, %44 : vector<16x8xf32>
    %46 = arith.truncf %45 : vector<16x8xf32> to vector<16x8xbf16>
    %cst_20 = arith.constant dense<0.000000e+00> : vector<16x32xf32>
    %47 = tpu.matmul %46, %37, %cst_20 {dimension_numbers = #tpu.dot_dimension_numbers<[1], [0], [0], [1], [0, 0, 1, 1], [], []>} : vector<16x8xbf16>, vector<8x32xbf16>, vector<16x32xf32> -> vector<16x32xf32>
    %48 = vector.extract_strided_slice %47 {offsets = [0, 0], sizes = [8, 32], strides = [1, 1]} : vector<16x32xf32> to vector<8x32xf32>
    %49 = vector.extract_strided_slice %47 {offsets = [8, 0], sizes = [8, 32], strides = [1, 1]} : vector<16x32xf32> to vector<8x32xf32>
    %50 = tpu.concatenate %48, %49 in 1 : vector<8x32xf32>, vector<8x32xf32> -> vector<8x64xf32>
    %51 = vector.extract_strided_slice %32 {offsets = [0, 64], sizes = [8, 32], strides = [1, 1]} : vector<8x256xbf16> to vector<8x32xbf16>
    %52 = vector.extract_strided_slice %32 {offsets = [0, 96], sizes = [8, 32], strides = [1, 1]} : vector<8x256xbf16> to vector<8x32xbf16>
    %53 = tpu.concatenate %51, %52 in 0 : vector<8x32xbf16>, vector<8x32xbf16> -> vector<16x32xbf16>
    %54 = vector.extract_strided_slice %32 {offsets = [0, 160], sizes = [8, 32], strides = [1, 1]} : vector<8x256xbf16> to vector<8x32xbf16>
    %55 = vector.extract_strided_slice %32 {offsets = [0, 224], sizes = [8, 32], strides = [1, 1]} : vector<8x256xbf16> to vector<8x32xbf16>
    "tpu.trace_start"() <{level = 10 : i32, message = "qd,kd->qk"}> : () -> ()
    %cst_21 = arith.constant dense<0.000000e+00> : vector<16x8xf32>
    %56 = tpu.matmul %53, %54, %cst_21 {dimension_numbers = #tpu.dot_dimension_numbers<[1], [1], [0], [0], [0, 0, 1, 0], [], []>} : vector<16x32xbf16>, vector<8x32xbf16>, vector<16x8xf32> -> vector<16x8xf32>
    "tpu.trace_stop"() : () -> ()
    %57 = arith.addf %56, %3 : vector<16x8xf32>
    %58 = math.exp %57 : vector<16x8xf32>
    %cst_22 = arith.constant dense<0.000000e+00> : vector<16xf32>
    %59 = vector.multi_reduction <add>, %58, %cst_22 [1] : vector<16x8xf32> to vector<16xf32>
    %60 = vector.shape_cast %59 : vector<16xf32> to vector<16x1xf32>
    %61 = tpu.reciprocal %60 : vector<16x1xf32> -> vector<16x1xf32>
    %62 = vector.broadcast %61 : vector<16x1xf32> to vector<16x8xf32>
    %63 = arith.mulf %58, %62 : vector<16x8xf32>
    %64 = arith.truncf %63 : vector<16x8xf32> to vector<16x8xbf16>
    %cst_23 = arith.constant dense<0.000000e+00> : vector<16x32xf32>
    %65 = tpu.matmul %64, %55, %cst_23 {dimension_numbers = #tpu.dot_dimension_numbers<[1], [0], [0], [1], [0, 0, 1, 1], [], []>} : vector<16x8xbf16>, vector<8x32xbf16>, vector<16x32xf32> -> vector<16x32xf32>
    %66 = vector.extract_strided_slice %65 {offsets = [0, 0], sizes = [8, 32], strides = [1, 1]} : vector<16x32xf32> to vector<8x32xf32>
    %67 = vector.extract_strided_slice %65 {offsets = [8, 0], sizes = [8, 32], strides = [1, 1]} : vector<16x32xf32> to vector<8x32xf32>
    %68 = tpu.concatenate %66, %67 in 1 : vector<8x32xf32>, vector<8x32xf32> -> vector<8x64xf32>
    %69 = tpu.concatenate %50, %68 in 1 : vector<8x64xf32>, vector<8x64xf32> -> vector<8x128xf32>
    %70 = arith.truncf %69 : vector<8x128xf32> to vector<8x128xbf16>
    %c0_24 = arith.constant 0 : index
    %c0_25 = arith.constant 0 : index
    %c0_26 = arith.constant 0 : index
    %71 = vector.load %arg2[%c0_24, %c0_25, %c0_26] : memref<2x128x128xbf16, #tpu.memory_space<vmem>>, vector<1x128x128xbf16>
    %72 = vector.shape_cast %71 : vector<1x128x128xbf16> to vector<128x128xbf16>
    %cst_27 = arith.constant dense<0.000000e+00> : vector<8x128xf32>
    %73 = tpu.matmul %70, %72, %cst_27 {dimension_numbers = #tpu.dot_dimension_numbers<[1], [0], [0], [1], [0, 0, 1, 1], [], []>} : vector<8x128xbf16>, vector<128x128xbf16>, vector<8x128xf32> -> vector<8x128xf32>
    %74 = arith.truncf %73 : vector<8x128xf32> to vector<8x128xbf16>
    %75 = arith.addf %4, %74 : vector<8x128xbf16>
    %76 = arith.extf %75 : vector<8x128xbf16> to vector<8x128xf32>
    %c0_28 = arith.constant 0 : index
    %c0_29 = arith.constant 0 : index
    %c0_30 = arith.constant 0 : index
    %77 = vector.load %arg6[%c0_28, %c0_29, %c0_30] : memref<2x1x128xbf16, #tpu.memory_space<vmem>>, vector<1x1x128xbf16>
    %78 = vector.shape_cast %77 : vector<1x1x128xbf16> to vector<1x128xbf16>
    %79 = arith.mulf %76, %76 : vector<8x128xf32>
    %cst_31 = arith.constant dense<0.000000e+00> : vector<8xf32>
    %80 = vector.multi_reduction <add>, %79, %cst_31 [1] : vector<8x128xf32> to vector<8xf32>
    %81 = vector.shape_cast %80 : vector<8xf32> to vector<8x1xf32>
    %cst_32 = arith.constant 1.280000e+02 : f32
    %82 = vector.broadcast %cst_32 : f32 to vector<8x1xf32>
    %83 = arith.divf %81, %82 : vector<8x1xf32>
    %cst_33 = arith.constant 9.99999974E-6 : f32
    %84 = vector.broadcast %cst_33 : f32 to vector<8x1xf32>
    %85 = arith.addf %83, %84 : vector<8x1xf32>
    %86 = math.rsqrt %85 : vector<8x1xf32>
    %87 = vector.broadcast %86 : vector<8x1xf32> to vector<8x128xf32>
    %88 = arith.mulf %76, %87 : vector<8x128xf32>
    %89 = arith.extf %78 : vector<1x128xbf16> to vector<1x128xf32>
    %90 = vector.broadcast %89 : vector<1x128xf32> to vector<8x128xf32>
    %91 = arith.mulf %88, %90 : vector<8x128xf32>
    %92 = arith.truncf %91 : vector<8x128xf32> to vector<8x128xbf16>
    %c0_34 = arith.constant 0 : index
    %c0_35 = arith.constant 0 : index
    %c0_36 = arith.constant 0 : index
    %93 = vector.load %arg3[%c0_34, %c0_35, %c0_36] : memref<2x128x512xbf16, #tpu.memory_space<vmem>>, vector<1x128x512xbf16>
    %94 = vector.shape_cast %93 : vector<1x128x512xbf16> to vector<128x512xbf16>
    %cst_37 = arith.constant dense<0.000000e+00> : vector<8x512xf32>
    %95 = tpu.matmul %92, %94, %cst_37 {dimension_numbers = #tpu.dot_dimension_numbers<[1], [0], [0], [1], [0, 0, 1, 1], [], []>} : vector<8x128xbf16>, vector<128x512xbf16>, vector<8x512xf32> -> vector<8x512xf32>
    %96 = vector.extract_strided_slice %95 {offsets = [0, 0], sizes = [8, 256], strides = [1, 1]} : vector<8x512xf32> to vector<8x256xf32>
    %97 = vector.extract_strided_slice %95 {offsets = [0, 256], sizes = [8, 256], strides = [1, 1]} : vector<8x512xf32> to vector<8x256xf32>
    %98 = arith.negf %96 : vector<8x256xf32>
    %99 = math.exp %98 : vector<8x256xf32>
    %cst_38 = arith.constant 1.000000e+00 : f32
    %100 = vector.broadcast %cst_38 : f32 to vector<8x256xf32>
    %101 = arith.addf %100, %99 : vector<8x256xf32>
    %102 = arith.divf %100, %101 : vector<8x256xf32>
    %103 = arith.mulf %96, %102 : vector<8x256xf32>
    %104 = arith.mulf %103, %97 : vector<8x256xf32>
    %105 = arith.truncf %104 : vector<8x256xf32> to vector<8x256xbf16>
    %c0_39 = arith.constant 0 : index
    %c0_40 = arith.constant 0 : index
    %c0_41 = arith.constant 0 : index
    %106 = vector.load %arg4[%c0_39, %c0_40, %c0_41] : memref<2x256x128xbf16, #tpu.memory_space<vmem>>, vector<1x256x128xbf16>
    %107 = vector.shape_cast %106 : vector<1x256x128xbf16> to vector<256x128xbf16>
    %cst_42 = arith.constant dense<0.000000e+00> : vector<8x128xf32>
    %108 = tpu.matmul %105, %107, %cst_42 {dimension_numbers = #tpu.dot_dimension_numbers<[1], [0], [0], [1], [0, 0, 1, 1], [], []>} : vector<8x256xbf16>, vector<256x128xbf16>, vector<8x128xf32> -> vector<8x128xf32>
    %109 = arith.truncf %108 : vector<8x128xf32> to vector<8x128xbf16>
    %110 = arith.addf %75, %109 : vector<8x128xbf16>
    %111 = tpu.concatenate %74, %109, %110 in 1 : vector<8x128xbf16>, vector<8x128xbf16>, vector<8x128xbf16> -> vector<8x384xbf16>
    %c0_43 = arith.constant 0 : index
    %c0_44 = arith.constant 0 : index
    %c0_45 = arith.constant 0 : index
    %112 = vector.load %arg11[%c0_43, %c0_44, %c0_45] : memref<2x8x384xbf16, #tpu.memory_space<vmem>>, vector<1x8x384xbf16>
    %113 = vector.shape_cast %112 : vector<1x8x384xbf16> to vector<8x384xbf16>
    %114 = vector.shape_cast %111 : vector<8x384xbf16> to vector<1x8x384xbf16>
    tpu.vector_store %arg11[%c0_43, %c0_44, %c0_45], %114 {strides = array<i32>} : memref<2x8x384xbf16, #tpu.memory_space<vmem>>, vector<1x8x384xbf16>,
    %115 = arith.extf %110 : vector<8x128xbf16> to vector<8x128xf32>
    %c1 = arith.constant 1 : index
    %c0_46 = arith.constant 0 : index
    %c0_47 = arith.constant 0 : index
    %116 = vector.load %arg5[%c1, %c0_46, %c0_47] : memref<2x1x128xbf16, #tpu.memory_space<vmem>>, vector<1x1x128xbf16>
    %117 = vector.shape_cast %116 : vector<1x1x128xbf16> to vector<1x128xbf16>
    %118 = arith.mulf %115, %115 : vector<8x128xf32>
    %cst_48 = arith.constant dense<0.000000e+00> : vector<8xf32>
    %119 = vector.multi_reduction <add>, %118, %cst_48 [1] : vector<8x128xf32> to vector<8xf32>
    %120 = vector.shape_cast %119 : vector<8xf32> to vector<8x1xf32>
    %cst_49 = arith.constant 1.280000e+02 : f32
    %121 = vector.broadcast %cst_49 : f32 to vector<8x1xf32>
    %122 = arith.divf %120, %121 : vector<8x1xf32>
    %cst_50 = arith.constant 9.99999974E-6 : f32
    %123 = vector.broadcast %cst_50 : f32 to vector<8x1xf32>
    %124 = arith.addf %122, %123 : vector<8x1xf32>
    %125 = math.rsqrt %124 : vector<8x1xf32>
    %126 = vector.broadcast %125 : vector<8x1xf32> to vector<8x128xf32>
    %127 = arith.mulf %115, %126 : vector<8x128xf32>
    %128 = arith.extf %117 : vector<1x128xbf16> to vector<1x128xf32>
    %129 = vector.broadcast %128 : vector<1x128xf32> to vector<8x128xf32>
    %130 = arith.mulf %127, %129 : vector<8x128xf32>
    %131 = arith.truncf %130 : vector<8x128xf32> to vector<8x128xbf16>
    %c1_51 = arith.constant 1 : index
    %c0_52 = arith.constant 0 : index
    %c0_53 = arith.constant 0 : index
    %132 = vector.load %arg1[%c1_51, %c0_52, %c0_53] : memref<2x128x256xbf16, #tpu.memory_space<vmem>>, vector<1x128x256xbf16>
    %133 = vector.shape_cast %132 : vector<1x128x256xbf16> to vector<128x256xbf16>
    %cst_54 = arith.constant dense<0.000000e+00> : vector<8x256xf32>
    %134 = tpu.matmul %131, %133, %cst_54 {dimension_numbers = #tpu.dot_dimension_numbers<[1], [0], [0], [1], [0, 0, 1, 1], [], []>} : vector<8x128xbf16>, vector<128x256xbf16>, vector<8x256xf32> -> vector<8x256xf32>
    %135 = arith.mulf %134, %0 : vector<8x256xf32>
    %c16_i32_55 = arith.constant 16 : i32
    %136 = tpu.dynamic_rotate %134 by %c16_i32_55 dim 1 : vector<8x256xf32>, i32 -> vector<8x256xf32>
    %137 = arith.mulf %136, %2 : vector<8x256xf32>
    %138 = arith.addf %135, %137 : vector<8x256xf32>
    %c240_i32_56 = arith.constant 240 : i32
    %139 = tpu.dynamic_rotate %134 by %c240_i32_56 dim 1 : vector<8x256xf32>, i32 -> vector<8x256xf32>
    %140 = arith.mulf %139, %1 : vector<8x256xf32>
    %141 = arith.addf %138, %140 : vector<8x256xf32>
    %142 = arith.truncf %141 : vector<8x256xf32> to vector<8x256xbf16>
    %143 = vector.extract_strided_slice %142 {offsets = [0, 0], sizes = [8, 32], strides = [1, 1]} : vector<8x256xbf16> to vector<8x32xbf16>
    %144 = vector.extract_strided_slice %142 {offsets = [0, 32], sizes = [8, 32], strides = [1, 1]} : vector<8x256xbf16> to vector<8x32xbf16>
    %145 = tpu.concatenate %143, %144 in 0 : vector<8x32xbf16>, vector<8x32xbf16> -> vector<16x32xbf16>
    %146 = vector.extract_strided_slice %142 {offsets = [0, 128], sizes = [8, 32], strides = [1, 1]} : vector<8x256xbf16> to vector<8x32xbf16>
    %147 = vector.extract_strided_slice %142 {offsets = [0, 192], sizes = [8, 32], strides = [1, 1]} : vector<8x256xbf16> to vector<8x32xbf16>
    "tpu.trace_start"() <{level = 10 : i32, message = "qd,kd->qk"}> : () -> ()
    %cst_57 = arith.constant dense<0.000000e+00> : vector<16x8xf32>
    %148 = tpu.matmul %145, %146, %cst_57 {dimension_numbers = #tpu.dot_dimension_numbers<[1], [1], [0], [0], [0, 0, 1, 0], [], []>} : vector<16x32xbf16>, vector<8x32xbf16>, vector<16x8xf32> -> vector<16x8xf32>
    "tpu.trace_stop"() : () -> ()
    %149 = arith.addf %148, %3 : vector<16x8xf32>
    %150 = math.exp %149 : vector<16x8xf32>
    %cst_58 = arith.constant dense<0.000000e+00> : vector<16xf32>
    %151 = vector.multi_reduction <add>, %150, %cst_58 [1] : vector<16x8xf32> to vector<16xf32>
    %152 = vector.shape_cast %151 : vector<16xf32> to vector<16x1xf32>
    %153 = tpu.reciprocal %152 : vector<16x1xf32> -> vector<16x1xf32>
    %154 = vector.broadcast %153 : vector<16x1xf32> to vector<16x8xf32>
    %155 = arith.mulf %150, %154 : vector<16x8xf32>
    %156 = arith.truncf %155 : vector<16x8xf32> to vector<16x8xbf16>
    %cst_59 = arith.constant dense<0.000000e+00> : vector<16x32xf32>
    %157 = tpu.matmul %156, %147, %cst_59 {dimension_numbers = #tpu.dot_dimension_numbers<[1], [0], [0], [1], [0, 0, 1, 1], [], []>} : vector<16x8xbf16>, vector<8x32xbf16>, vector<16x32xf32> -> vector<16x32xf32>
    %158 = vector.extract_strided_slice %157 {offsets = [0, 0], sizes = [8, 32], strides = [1, 1]} : vector<16x32xf32> to vector<8x32xf32>
    %159 = vector.extract_strided_slice %157 {offsets = [8, 0], sizes = [8, 32], strides = [1, 1]} : vector<16x32xf32> to vector<8x32xf32>
    %160 = tpu.concatenate %158, %159 in 1 : vector<8x32xf32>, vector<8x32xf32> -> vector<8x64xf32>
    %161 = vector.extract_strided_slice %142 {offsets = [0, 64], sizes = [8, 32], strides = [1, 1]} : vector<8x256xbf16> to vector<8x32xbf16>
    %162 = vector.extract_strided_slice %142 {offsets = [0, 96], sizes = [8, 32], strides = [1, 1]} : vector<8x256xbf16> to vector<8x32xbf16>
    %163 = tpu.concatenate %161, %162 in 0 : vector<8x32xbf16>, vector<8x32xbf16> -> vector<16x32xbf16>
    %164 = vector.extract_strided_slice %142 {offsets = [0, 160], sizes = [8, 32], strides = [1, 1]} : vector<8x256xbf16> to vector<8x32xbf16>
    %165 = vector.extract_strided_slice %142 {offsets = [0, 224], sizes = [8, 32], strides = [1, 1]} : vector<8x256xbf16> to vector<8x32xbf16>
    "tpu.trace_start"() <{level = 10 : i32, message = "qd,kd->qk"}> : () -> ()
    %cst_60 = arith.constant dense<0.000000e+00> : vector<16x8xf32>
    %166 = tpu.matmul %163, %164, %cst_60 {dimension_numbers = #tpu.dot_dimension_numbers<[1], [1], [0], [0], [0, 0, 1, 0], [], []>} : vector<16x32xbf16>, vector<8x32xbf16>, vector<16x8xf32> -> vector<16x8xf32>
    "tpu.trace_stop"() : () -> ()
    %167 = arith.addf %166, %3 : vector<16x8xf32>
    %168 = math.exp %167 : vector<16x8xf32>
    %cst_61 = arith.constant dense<0.000000e+00> : vector<16xf32>
    %169 = vector.multi_reduction <add>, %168, %cst_61 [1] : vector<16x8xf32> to vector<16xf32>
    %170 = vector.shape_cast %169 : vector<16xf32> to vector<16x1xf32>
    %171 = tpu.reciprocal %170 : vector<16x1xf32> -> vector<16x1xf32>
    %172 = vector.broadcast %171 : vector<16x1xf32> to vector<16x8xf32>
    %173 = arith.mulf %168, %172 : vector<16x8xf32>
    %174 = arith.truncf %173 : vector<16x8xf32> to vector<16x8xbf16>
    %cst_62 = arith.constant dense<0.000000e+00> : vector<16x32xf32>
    %175 = tpu.matmul %174, %165, %cst_62 {dimension_numbers = #tpu.dot_dimension_numbers<[1], [0], [0], [1], [0, 0, 1, 1], [], []>} : vector<16x8xbf16>, vector<8x32xbf16>, vector<16x32xf32> -> vector<16x32xf32>
    %176 = vector.extract_strided_slice %175 {offsets = [0, 0], sizes = [8, 32], strides = [1, 1]} : vector<16x32xf32> to vector<8x32xf32>
    %177 = vector.extract_strided_slice %175 {offsets = [8, 0], sizes = [8, 32], strides = [1, 1]} : vector<16x32xf32> to vector<8x32xf32>
    %178 = tpu.concatenate %176, %177 in 1 : vector<8x32xf32>, vector<8x32xf32> -> vector<8x64xf32>
    %179 = tpu.concatenate %160, %178 in 1 : vector<8x64xf32>, vector<8x64xf32> -> vector<8x128xf32>
    %180 = arith.truncf %179 : vector<8x128xf32> to vector<8x128xbf16>
    %c1_63 = arith.constant 1 : index
    %c0_64 = arith.constant 0 : index
    %c0_65 = arith.constant 0 : index
    %181 = vector.load %arg2[%c1_63, %c0_64, %c0_65] : memref<2x128x128xbf16, #tpu.memory_space<vmem>>, vector<1x128x128xbf16>
    %182 = vector.shape_cast %181 : vector<1x128x128xbf16> to vector<128x128xbf16>
    %cst_66 = arith.constant dense<0.000000e+00> : vector<8x128xf32>
    %183 = tpu.matmul %180, %182, %cst_66 {dimension_numbers = #tpu.dot_dimension_numbers<[1], [0], [0], [1], [0, 0, 1, 1], [], []>} : vector<8x128xbf16>, vector<128x128xbf16>, vector<8x128xf32> -> vector<8x128xf32>
    %184 = arith.truncf %183 : vector<8x128xf32> to vector<8x128xbf16>
    %185 = arith.addf %110, %184 : vector<8x128xbf16>
    %186 = arith.extf %185 : vector<8x128xbf16> to vector<8x128xf32>
    %c1_67 = arith.constant 1 : index
    %c0_68 = arith.constant 0 : index
    %c0_69 = arith.constant 0 : index
    %187 = vector.load %arg6[%c1_67, %c0_68, %c0_69] : memref<2x1x128xbf16, #tpu.memory_space<vmem>>, vector<1x1x128xbf16>
    %188 = vector.shape_cast %187 : vector<1x1x128xbf16> to vector<1x128xbf16>
    %189 = arith.mulf %186, %186 : vector<8x128xf32>
    %cst_70 = arith.constant dense<0.000000e+00> : vector<8xf32>
    %190 = vector.multi_reduction <add>, %189, %cst_70 [1] : vector<8x128xf32> to vector<8xf32>
    %191 = vector.shape_cast %190 : vector<8xf32> to vector<8x1xf32>
    %cst_71 = arith.constant 1.280000e+02 : f32
    %192 = vector.broadcast %cst_71 : f32 to vector<8x1xf32>
    %193 = arith.divf %191, %192 : vector<8x1xf32>
    %cst_72 = arith.constant 9.99999974E-6 : f32
    %194 = vector.broadcast %cst_72 : f32 to vector<8x1xf32>
    %195 = arith.addf %193, %194 : vector<8x1xf32>
    %196 = math.rsqrt %195 : vector<8x1xf32>
    %197 = vector.broadcast %196 : vector<8x1xf32> to vector<8x128xf32>
    %198 = arith.mulf %186, %197 : vector<8x128xf32>
    %199 = arith.extf %188 : vector<1x128xbf16> to vector<1x128xf32>
    %200 = vector.broadcast %199 : vector<1x128xf32> to vector<8x128xf32>
    %201 = arith.mulf %198, %200 : vector<8x128xf32>
    %202 = arith.truncf %201 : vector<8x128xf32> to vector<8x128xbf16>
    %c1_73 = arith.constant 1 : index
    %c0_74 = arith.constant 0 : index
    %c0_75 = arith.constant 0 : index
    %203 = vector.load %arg3[%c1_73, %c0_74, %c0_75] : memref<2x128x512xbf16, #tpu.memory_space<vmem>>, vector<1x128x512xbf16>
    %204 = vector.shape_cast %203 : vector<1x128x512xbf16> to vector<128x512xbf16>
    %cst_76 = arith.constant dense<0.000000e+00> : vector<8x512xf32>
    %205 = tpu.matmul %202, %204, %cst_76 {dimension_numbers = #tpu.dot_dimension_numbers<[1], [0], [0], [1], [0, 0, 1, 1], [], []>} : vector<8x128xbf16>, vector<128x512xbf16>, vector<8x512xf32> -> vector<8x512xf32>
    %206 = vector.extract_strided_slice %205 {offsets = [0, 0], sizes = [8, 256], strides = [1, 1]} : vector<8x512xf32> to vector<8x256xf32>
    %207 = vector.extract_strided_slice %205 {offsets = [0, 256], sizes = [8, 256], strides = [1, 1]} : vector<8x512xf32> to vector<8x256xf32>
    %208 = arith.negf %206 : vector<8x256xf32>
    %209 = math.exp %208 : vector<8x256xf32>
    %cst_77 = arith.constant 1.000000e+00 : f32
    %210 = vector.broadcast %cst_77 : f32 to vector<8x256xf32>
    %211 = arith.addf %210, %209 : vector<8x256xf32>
    %212 = arith.divf %210, %211 : vector<8x256xf32>
    %213 = arith.mulf %206, %212 : vector<8x256xf32>
    %214 = arith.mulf %213, %207 : vector<8x256xf32>
    %215 = arith.truncf %214 : vector<8x256xf32> to vector<8x256xbf16>
    %c1_78 = arith.constant 1 : index
    %c0_79 = arith.constant 0 : index
    %c0_80 = arith.constant 0 : index
    %216 = vector.load %arg4[%c1_78, %c0_79, %c0_80] : memref<2x256x128xbf16, #tpu.memory_space<vmem>>, vector<1x256x128xbf16>
    %217 = vector.shape_cast %216 : vector<1x256x128xbf16> to vector<256x128xbf16>
    %cst_81 = arith.constant dense<0.000000e+00> : vector<8x128xf32>
    %218 = tpu.matmul %215, %217, %cst_81 {dimension_numbers = #tpu.dot_dimension_numbers<[1], [0], [0], [1], [0, 0, 1, 1], [], []>} : vector<8x256xbf16>, vector<256x128xbf16>, vector<8x128xf32> -> vector<8x128xf32>
    %219 = arith.truncf %218 : vector<8x128xf32> to vector<8x128xbf16>
    %220 = arith.addf %185, %219 : vector<8x128xbf16>
    %221 = tpu.concatenate %184, %219, %220 in 1 : vector<8x128xbf16>, vector<8x128xbf16>, vector<8x128xbf16> -> vector<8x384xbf16>
    %c1_82 = arith.constant 1 : index
    %c0_83 = arith.constant 0 : index
    %c0_84 = arith.constant 0 : index
    %222 = vector.load %arg11[%c1_82, %c0_83, %c0_84] : memref<2x8x384xbf16, #tpu.memory_space<vmem>>, vector<1x8x384xbf16>
    %223 = vector.shape_cast %222 : vector<1x8x384xbf16> to vector<8x384xbf16>
    %224 = vector.shape_cast %221 : vector<8x384xbf16> to vector<1x8x384xbf16>
    tpu.vector_store %arg11[%c1_82, %c0_83, %c0_84], %224 {strides = array<i32>} : memref<2x8x384xbf16, #tpu.memory_space<vmem>>, vector<1x8x384xbf16>,
    return
  }
}

</mosaic_0001>

<llo_original>
// kernel: llama_forward_stack.1
$region0: #{llama_forward_stack.1}
  #allocation0 [shape = 'u32[]', space=smem, size = 0x4, offset = 0x4, fixed_abs, tag = 'smem constant byte address 0x4 - core index']
  #allocation1 [shape = 'u32[144,128]{1,0:T(1,128)}', space=vmem, size = 0x12000, scoped, tag = 'internal scratch']
  %s0 = inlined_call_operand.hbm [shape: bf16[8,128], index: 0, kind: input, shape index: {}]
  %s1 = inlined_call_operand.hbm [shape: bf16[2,128,256], index: 1, kind: input, shape index: {}]
  %s2 = inlined_call_operand.hbm [shape: bf16[2,128,128], index: 2, kind: input, shape index: {}]
  %s3 = inlined_call_operand.hbm [shape: bf16[2,128,512], index: 3, kind: input, shape index: {}]
  %s4 = inlined_call_operand.hbm [shape: bf16[2,256,128], index: 4, kind: input, shape index: {}]
  %s5 = inlined_call_operand.vmem [shape: bf16[2,1,128], index: 5, kind: input, shape index: {}]
  %s6 = inlined_call_operand.vmem [shape: bf16[2,1,128], index: 6, kind: input, shape index: {}]
  %s7 = inlined_call_operand.vmem [shape: f32[8,256], index: 7, kind: input, shape index: {}]
  %s8 = inlined_call_operand.vmem [shape: f32[8,256], index: 8, kind: input, shape index: {}]
  %s9 = inlined_call_operand.vmem [shape: f32[8,256], index: 9, kind: input, shape index: {}]
  %s10 = inlined_call_operand.vmem [shape: f32[16,8], index: 10, kind: input, shape index: {}]
  %s11 = inlined_call_operand.hbm [shape: bf16[2,8,384], index: 11, kind: output, shape index: {}]
  %s12 = sld [smem:[#allocation0]]
  $region74: #{llama_forward_stack.1} parent=0
    _
  %s14 = ssub.s32 1, %s12
  %s15 = scalar_select 0, %s14, %s12
  $region1: #{llama_forward_stack.1} parent=0
    #allocation2 [shape = 'u8[2048]{0}', space=vmem, size = 0x800, scoped, tag = 'input window, operand 0, single buffered']
    #allocation3 [shape = 's32[1]{0}', space=sflag, size = 0x4, scoped, tag = 'scoped memory for llama_forward_stack.1']
    #allocation4 [shape = 's32[1]{0}', space=sflag, size = 0x4, scoped, tag = 'scoped memory for llama_forward_stack.1']
    #allocation5 [shape = 'u8[131072]{0}', space=vmem, size = 0x20000, scoped, tag = 'input window, operand 1, single buffered']
    #allocation6 [shape = 's32[1]{0}', space=sflag, size = 0x4, scoped, tag = 'scoped memory for llama_forward_stack.1']
    #allocation7 [shape = 'u8[65536]{0}', space=vmem, size = 0x10000, scoped, tag = 'input window, operand 2, single buffered']
    #allocation8 [shape = 'u8[262144]{0}', space=vmem, size = 0x40000, scoped, tag = 'input window, operand 3, single buffered']
    #allocation9 [shape = 's32[1]{0}', space=sflag, size = 0x4, scoped, tag = 'scoped memory for llama_forward_stack.1']
    #allocation10 [shape = 'u8[131072]{0}', space=vmem, size = 0x20000, scoped, tag = 'input window, operand 4, single buffered']
    #allocation11 [shape = 'u8[12288]{0}', space=vmem, size = 0x3000, scoped, tag = 'output window, operand 0, single buffered']
    %16 = vsyncpa [#allocation3], 0
    %17 = vsyncpa [#allocation6], 0
    %18 = vsyncpa [#allocation9], 0
    %19 = vsyncpa [#allocation4], 0
    // Predicated region
    $region2: #{llama_forward_stack.1} parent=1 // pred_check
      _
    $region3: #{llama_forward_stack.1} parent=1 // pred_check_branch
      %21 = sbr.rel (0) target = $region5
    $region4: #{llama_forward_stack.1} parent=1 // pred_region
      %s23 = ssub.s32 64, 64
      %24 = vsyncadd [#allocation3], %s23
      %s26 = sshll.u32 [#allocation2], 4
      %s27 = int_to_ptr.vmem [resolvable:$true] %s26
      %29 = dma.hbm_to_vmem [thread:$0]  %s0, 64, %s27, [#allocation3]
    $region5: #{llama_forward_stack.1} parent=1 // pred_fallthru
      _
    // Predicated region
    $region6: #{llama_forward_stack.1} parent=1 // pred_check
      _
    $region7: #{llama_forward_stack.1} parent=1 // pred_check_branch
      %31 = sbr.rel (0) target = $region9
    $region8: #{llama_forward_stack.1} parent=1 // pred_region
      %s33 = ssub.s32 4096, 4096
      %34 = vsyncadd [#allocation6], %s33
      %s35 = sshll.u32 [#allocation5], 4
      %s36 = int_to_ptr.vmem [resolvable:$true] %s35
      %41 = dma.hbm_to_vmem [thread:$0]  %s1, 4096, %s36, [#allocation6], 128, 128, 8
    $region9: #{llama_forward_stack.1} parent=1 // pred_fallthru
      _
    // Predicated region
    $region10: #{llama_forward_stack.1} parent=1 // pred_check
      _
    $region11: #{llama_forward_stack.1} parent=1 // pred_check_branch
      %43 = sbr.rel (0) target = $region13
    $region12: #{llama_forward_stack.1} parent=1 // pred_region
      %s45 = ssub.s32 2048, 2048
      %46 = vsyncadd [#allocation6], %s45
      %s47 = sshll.u32 [#allocation7], 4
      %s48 = int_to_ptr.vmem [resolvable:$true] %s47
      %53 = dma.hbm_to_vmem [thread:$0]  %s2, 2048, %s48, [#allocation6], 64, 64, 4
    $region13: #{llama_forward_stack.1} parent=1 // pred_fallthru
      _
    // Predicated region
    $region14: #{llama_forward_stack.1} parent=1 // pred_check
      _
    $region15: #{llama_forward_stack.1} parent=1 // pred_check_branch
      %55 = sbr.rel (0) target = $region17
    $region16: #{llama_forward_stack.1} parent=1 // pred_region
      %s57 = ssub.s32 8192, 8192
      %58 = vsyncadd [#allocation9], %s57
      %s59 = sshll.u32 [#allocation8], 4
      %s60 = int_to_ptr.vmem [resolvable:$true] %s59
      %65 = dma.hbm_to_vmem [thread:$0]  %s3, 8192, %s60, [#allocation9], 256, 256, 16
    $region17: #{llama_forward_stack.1} parent=1 // pred_fallthru
      _
    // Predicated region
    $region18: #{llama_forward_stack.1} parent=1 // pred_check
      _
    $region19: #{llama_forward_stack.1} parent=1 // pred_check_branch
      %67 = sbr.rel (0) target = $region21
    $region20: #{llama_forward_stack.1} parent=1 // pred_region
      %s69 = ssub.s32 4096, 4096
      %70 = vsyncadd [#allocation9], %s69
      %s71 = sshll.u32 [#allocation10], 4
      %s72 = int_to_ptr.vmem [resolvable:$true] %s71
      %77 = dma.hbm_to_vmem [thread:$0]  %s4, 4096, %s72, [#allocation9], 64, 64, 4
    $region21: #{llama_forward_stack.1} parent=1 // pred_fallthru
      _
    // Predicated region
    $region22: #{llama_forward_stack.1} parent=1 // pred_check
      _
    $region23: #{llama_forward_stack.1} parent=1 // pred_check_branch
      %79 = sbr.rel (0) target = $region25
    $region24: #{llama_forward_stack.1} parent=1 // pred_region
      _
    $region25: #{llama_forward_stack.1} parent=1 // pred_fallthru
      _
    // Predicated region
    $region26: #{llama_forward_stack.1} parent=1 // pred_check
      _
    $region27: #{llama_forward_stack.1} parent=1 // pred_check_branch
      %81 = sbr.rel (0) target = $region29
    $region28: #{llama_forward_stack.1} parent=1 // pred_region
      _
    $region29: #{llama_forward_stack.1} parent=1 // pred_fallthru
      _
    // Predicated region
    $region30: #{llama_forward_stack.1} parent=1 // pred_check
      _
    $region31: #{llama_forward_stack.1} parent=1 // pred_check_branch
      %83 = sbr.rel (0) target = $region33
    $region32: #{llama_forward_stack.1} parent=1 // pred_region
      _
    $region33: #{llama_forward_stack.1} parent=1 // pred_fallthru
      _
    // Predicated region
    $region34: #{llama_forward_stack.1} parent=1 // pred_check
      _
    $region35: #{llama_forward_stack.1} parent=1 // pred_check_branch
      %85 = sbr.rel (0) target = $region37
    $region36: #{llama_forward_stack.1} parent=1 // pred_region
      _
    $region37: #{llama_forward_stack.1} parent=1 // pred_fallthru
      _
    // Predicated region
    $region38: #{llama_forward_stack.1} parent=1 // pred_check
      _
    $region39: #{llama_forward_stack.1} parent=1 // pred_check_branch
      %87 = sbr.rel (0) target = $region41
    $region40: #{llama_forward_stack.1} parent=1 // pred_region
      _
    $region41: #{llama_forward_stack.1} parent=1 // pred_fallthru
      _
    // Predicated region
    $region42: #{llama_forward_stack.1} parent=1 // pred_check
      _
    $region43: #{llama_forward_stack.1} parent=1 // pred_check_branch
      %89 = sbr.rel (0) target = $region45
    $region44: #{llama_forward_stack.1} parent=1 // pred_region
      _
    $region45: #{llama_forward_stack.1} parent=1 // pred_fallthru
      _
    // Predicated region
    $region46: #{llama_forward_stack.1} parent=1 // pred_check
      _
    $region47: #{llama_forward_stack.1} parent=1 // pred_check_branch
      %91 = sbr.rel (0) target = $region49
    $region48: #{llama_forward_stack.1} parent=1 // pred_region
      %92 = dma.done [#allocation3], 64
    $region49: #{llama_forward_stack.1} parent=1 // pred_fallthru
      _
    // Predicated region
    $region50: #{llama_forward_stack.1} parent=1 // pred_check
      _
    $region51: #{llama_forward_stack.1} parent=1 // pred_check_branch
      %94 = sbr.rel (0) target = $region53
    $region52: #{llama_forward_stack.1} parent=1 // pred_region
      %95 = dma.done [#allocation6], 4096
    $region53: #{llama_forward_stack.1} parent=1 // pred_fallthru
      _
    // Predicated region
    $region54: #{llama_forward_stack.1} parent=1 // pred_check
      _
    $region55: #{llama_forward_stack.1} parent=1 // pred_check_branch
      %97 = sbr.rel (0) target = $region57
    $region56: #{llama_forward_stack.1} parent=1 // pred_region
      %98 = dma.done [#allocation6], 2048
    $region57: #{llama_forward_stack.1} parent=1 // pred_fallthru
      _
    // Predicated region
    $region58: #{llama_forward_stack.1} parent=1 // pred_check
      _
    $region59: #{llama_forward_stack.1} parent=1 // pred_check_branch
      %100 = sbr.rel (0) target = $region61
    $region60: #{llama_forward_stack.1} parent=1 // pred_region
      %101 = dma.done [#allocation9], 8192
    $region61: #{llama_forward_stack.1} parent=1 // pred_fallthru
      _
    // Predicated region
    $region62: #{llama_forward_stack.1} parent=1 // pred_check
      _
    $region63: #{llama_forward_stack.1} parent=1 // pred_check_branch
      %103 = sbr.rel (0) target = $region65
    $region64: #{llama_forward_stack.1} parent=1 // pred_region
      %104 = dma.done [#allocation9], 4096
    $region65: #{llama_forward_stack.1} parent=1 // pred_fallthru
      _
    %v106 = vld [vmem:[%s7] sm:$0xff]
    %v107 = vld [vmem:[%s7 + $0x8] sm:$0xff]
    %v108 = vld [vmem:[%s8] sm:$0xff]
    %v109 = vld [vmem:[%s8 + $0x8] sm:$0xff]
    %v110 = vld [vmem:[%s9] sm:$0xff]
    %v111 = vld [vmem:[%s9 + $0x8] sm:$0xff]
    %v112 = vld [vmem:[%s10] sm:$0xff]
    %v113 = vld [vmem:[%s10 + $0x8] sm:$0xff]
    %v114 = vld [vmem:[#allocation2] sm:$0xf]
    %v115 = vunpack.c.l.bf16 %v114
    %v116 = vld [vmem:[%s5] sm:$0x1]
    %v117 = vmul.f32 %v115, %v115
    %118 = vadd.xlane.f32.xlu0 %v117
    %v119 = vpop.xlane.xlu0 %118
    %v120 = vrcp.pop 128.0
    %v121 = vmul.f32 %v119, %v120
    %v122 = vadd.f32 %v121, 1e-05
    %v123 = vrsqrt.pop %v122
    %v124 = vmul.f32 %v115, %v123
    %v125 = vunpack.c.l.bf16 %v116
    %v126 = vlaneseq
    %v127 = vshrl.u32 %v126, 7
    %v128 = vsub.s32 0, %v127
    %v129 = vrot.slane %v125, %v128
    %v130 = vmul.f32 %v124, %v129
    %v131 = vpack.c.bf16 %v130, %v130
    %v132 = vld [vmem:[#allocation5] sm:$0xff]
    %v133 = vld [vmem:[#allocation5 + $0x8] sm:$0xff]
    %v134 = vld [vmem:[#allocation5 + $0x10] sm:$0xff]
    %v135 = vld [vmem:[#allocation5 + $0x18] sm:$0xff]
    %v136 = vld [vmem:[#allocation5 + $0x20] sm:$0xff]
    %v137 = vld [vmem:[#allocation5 + $0x28] sm:$0xff]
    %v138 = vld [vmem:[#allocation5 + $0x30] sm:$0xff]
    %v139 = vld [vmem:[#allocation5 + $0x38] sm:$0xff]
    %v140 = vld [vmem:[#allocation5 + $0x40] sm:$0xff]
    %v141 = vld [vmem:[#allocation5 + $0x48] sm:$0xff]
    %v142 = vld [vmem:[#allocation5 + $0x50] sm:$0xff]
    %v143 = vld [vmem:[#allocation5 + $0x58] sm:$0xff]
    %v144 = vld [vmem:[#allocation5 + $0x60] sm:$0xff]
    %v145 = vld [vmem:[#allocation5 + $0x68] sm:$0xff]
    %v146 = vld [vmem:[#allocation5 + $0x70] sm:$0xff]
    %v147 = vld [vmem:[#allocation5 + $0x78] sm:$0xff]
    %v164 = vunpack.c.l.b16 %v132
    %v165 = vunpack.c.h.b16 %v132
    %v166 = vunpack.c.l.b16 %v133
    %v167 = vunpack.c.h.b16 %v133
    %v168 = vunpack.c.l.b16 %v134
    %v169 = vunpack.c.h.b16 %v134
    %v170 = vunpack.c.l.b16 %v135
    %v171 = vunpack.c.h.b16 %v135
    %v172 = vunpack.c.l.b16 %v136
    %v173 = vunpack.c.h.b16 %v136
    %v174 = vunpack.c.l.b16 %v137
    %v175 = vunpack.c.h.b16 %v137
    %v176 = vunpack.c.l.b16 %v138
    %v177 = vunpack.c.h.b16 %v138
    %v178 = vunpack.c.l.b16 %v139
    %v179 = vunpack.c.h.b16 %v139
    %v180 = vunpack.c.l.b16 %v140
    %v181 = vunpack.c.h.b16 %v140
    %v182 = vunpack.c.l.b16 %v141
    %v183 = vunpack.c.h.b16 %v141
    %v184 = vunpack.c.l.b16 %v142
    %v185 = vunpack.c.h.b16 %v142
    %v186 = vunpack.c.l.b16 %v143
    %v187 = vunpack.c.h.b16 %v143
    %v188 = vunpack.c.l.b16 %v144
    %v189 = vunpack.c.h.b16 %v144
    %v190 = vunpack.c.l.b16 %v145
    %v191 = vunpack.c.h.b16 %v145
    %v192 = vunpack.c.l.b16 %v146
    %v193 = vunpack.c.h.b16 %v146
    %v194 = vunpack.c.l.b16 %v147
    %v195 = vunpack.c.h.b16 %v147
    %v196 = vpack.c.b16 %v166, %v164
    %v197 = vpack.c.b16 %v167, %v165
    %v198 = vpack.c.b16 %v170, %v168
    %v199 = vpack.c.b16 %v171, %v169
    %v200 = vpack.c.b16 %v174, %v172
    %v201 = vpack.c.b16 %v175, %v173
    %v202 = vpack.c.b16 %v178, %v176
    %v203 = vpack.c.b16 %v179, %v177
    %v204 = vpack.c.b16 %v182, %v180
    %v205 = vpack.c.b16 %v183, %v181
    %v206 = vpack.c.b16 %v186, %v184
    %v207 = vpack.c.b16 %v187, %v185
    %v208 = vpack.c.b16 %v190, %v188
    %v209 = vpack.c.b16 %v191, %v189
    %v210 = vpack.c.b16 %v194, %v192
    %v211 = vpack.c.b16 %v195, %v193
    %228 = vmatprep.subr.bf16.mxu0 %v197
    %229 = vmatpush1.bf16.msra.mxu0 %v196
    %230 = vmatprep.subr.bf16.mxu0 %v199
    %231 = vmatpush1.bf16.msra.mxu0 %v198
    %232 = vmatprep.subr.bf16.mxu0 %v201
    %233 = vmatpush1.bf16.msra.mxu0 %v200
    %234 = vmatprep.subr.bf16.mxu0 %v203
    %235 = vmatpush1.bf16.msra.mxu0 %v202
    %236 = vmatprep.subr.bf16.mxu0 %v205
    %237 = vmatpush1.bf16.msra.mxu0 %v204
    %238 = vmatprep.subr.bf16.mxu0 %v207
    %239 = vmatpush1.bf16.msra.mxu0 %v206
    %240 = vmatprep.subr.bf16.mxu0 %v209
    %241 = vmatpush1.bf16.msra.mxu0 %v208
    %242 = vmatprep.subr.bf16.mxu0 %v211
    %243 = vmatpush1.bf16.msra.mxu0 %v210
    %244 = vmatprep.subr.bf16.mxu0 0
    %245 = vmatpush1.bf16.msra.mxu0 0
    %246 = vmatprep.subr.bf16.mxu0 0
    %247 = vmatpush1.bf16.msra.mxu0 0
    %248 = vmatprep.subr.bf16.mxu0 0
    %249 = vmatpush1.bf16.msra.mxu0 0
    %250 = vmatprep.subr.bf16.mxu0 0
    %251 = vmatpush1.bf16.msra.mxu0 0
    %252 = vmatprep.subr.bf16.mxu0 0
    %253 = vmatpush1.bf16.msra.mxu0 0
    %254 = vmatprep.subr.bf16.mxu0 0
    %255 = vmatpush1.bf16.msra.mxu0 0
    %256 = vmatprep.subr.bf16.mxu0 0
    %257 = vmatpush1.bf16.msra.mxu0 0
    %258 = vmatprep.subr.bf16.mxu0 0
    %259 = vmatpush1.bf16.msra.mxu0 0
    %260 = vmatprep.mubr.bf16.mxu0 0
    %261 = vmatmul.mubr.bf16.gmra.mrb[0].mxu0 %v131
    %v262 = vpop.f32.mrb[0].mxu0
    %v263 = vadd.f32 0.0, %v262
    %v264 = vpop.f32.mrb[0].mxu0
    %v265 = vadd.f32 0.0, %v264
    %v266 = vpop.f32.mrb[0].mxu0
    %v267 = vpop.f32.mrb[0].mxu0
    %268 = vdwg.mxu0
    %v269 = vmul.f32 %v263, %v106
    %v270 = vmul.f32 %v265, %v107
    %271 = vrot.lane.b32.xlu0 %v263, 16
    %v272 = vpop.permute.xlu0 %271
    %273 = vrot.lane.b32.xlu0 %v265, 16
    %v274 = vpop.permute.xlu0 %273
    %v275 = vlaneseq
    %v276 = vand.u32 %v275, 127
    %vm277 = vcmp.lt.s32.totalorder %v276, 16
    %v278 = vsel %vm277, %v272, %v274
    %v279 = vsel %vm277, %v274, %v272
    %v280 = vmul.f32 %v279, %v110
    %v281 = vmul.f32 %v278, %v111
    %v282 = vadd.f32 %v269, %v280
    %v283 = vadd.f32 %v270, %v281
    %284 = vrot.lane.b32.xlu0 %v263, 112
    %v285 = vpop.permute.xlu0 %284
    %286 = vrot.lane.b32.xlu0 %v265, 112
    %v287 = vpop.permute.xlu0 %286
    %vm288 = vcmp.lt.s32.totalorder %v276, 112
    %v289 = vsel %vm288, %v285, %v287
    %v290 = vsel %vm288, %v287, %v285
    %v291 = vmul.f32 %v289, %v108
    %v292 = vmul.f32 %v290, %v109
    %v293 = vadd.f32 %v282, %v291
    %v294 = vadd.f32 %v283, %v292
    %v295 = vpack.c.bf16 %v293, %v293
    %v296 = vpack.c.bf16 %v294, %v294
    %v298 = vrot.slane %v295, 4
    %299 = vrot.lane.b32.xlu0 %v298, 96
    %v300 = vpop.permute.xlu0 %299
    %vm301 = vcmask 1043456
    %v304 = vsel %vm301, %v295, %v300
    %vm305 = vcmask 261120
    %v306 = vsel %vm305, %v304, 0
    %v309 = vsel %vm305, %v296, 0
    %311 = vmatprep.subr.bf16.mxu0 0
    %312 = vmatpush1.bf16.xpose.msra.mxu0 %v309
    %313 = vmatprep.subr.bf16.mxu0 0
    %314 = vmatpush1.bf16.xpose.msra.mxu0 0
    %315 = vmatprep.subr.bf16.mxu0 0
    %316 = vmatpush1.bf16.xpose.msra.mxu0 0
    %317 = vmatprep.subr.bf16.mxu0 0
    %318 = vmatpush1.bf16.xpose.msra.mxu0 0
    %319 = vmatprep.subr.bf16.mxu0 0
    %320 = vmatpush1.bf16.xpose.msra.mxu0 0
    %321 = vmatprep.subr.bf16.mxu0 0
    %322 = vmatpush1.bf16.xpose.msra.mxu0 0
    %323 = vmatprep.subr.bf16.mxu0 0
    %324 = vmatpush1.bf16.xpose.msra.mxu0 0
    %325 = vmatprep.subr.bf16.mxu0 0
    %326 = vmatpush1.bf16.xpose.msra.mxu0 0
    %327 = vmatprep.subr.bf16.mxu0 0
    %328 = vmatpush1.bf16.xpose.msra.mxu0 0
    %329 = vmatprep.subr.bf16.mxu0 0
    %330 = vmatpush1.bf16.xpose.msra.mxu0 0
    %331 = vmatprep.subr.bf16.mxu0 0
    %332 = vmatpush1.bf16.xpose.msra.mxu0 0
    %333 = vmatprep.subr.bf16.mxu0 0
    %334 = vmatpush1.bf16.xpose.msra.mxu0 0
    %335 = vmatprep.subr.bf16.mxu0 0
    %336 = vmatpush1.bf16.xpose.msra.mxu0 0
    %337 = vmatprep.subr.bf16.mxu0 0
    %338 = vmatpush1.bf16.xpose.msra.mxu0 0
    %339 = vmatprep.subr.bf16.mxu0 0
    %340 = vmatpush1.bf16.xpose.msra.mxu0 0
    %341 = vmatprep.subr.bf16.mxu0 0
    %342 = vmatpush1.bf16.xpose.msra.mxu0 0
    %343 = vmatprep.mubr.bf16.mxu0 0
    %344 = vmatmul.mubr.bf16.gmra.mrb[0].mxu0 %v306
    %v345 = vpop.f32.mrb[0].mxu0
    %v346 = vadd.f32 %v112, %v345
    %v347 = vpop.f32.mrb[0].mxu0
    %v348 = vpop.f32.mrb[0].mxu0
    %v349 = vadd.f32 %v113, %v348
    %v350 = vpop.f32.mrb[0].mxu0
    %351 = vdwg.mxu0
    %v352 = vmul.f32 %v346, 1.442695
    %v353 = vpow.pop %v352
    %v354 = vmul.f32 %v349, 1.442695
    %v355 = vpow.pop %v354
    %vm356 = vcmask 64512
    %v357 = vsel %vm356, %v353, 0.0
    %358 = vadd.xlane.f32.xlu0 %v357
    %v359 = vpop.xlane.xlu0 %358
    %v360 = vsel %vm356, %v355, 0.0
    %361 = vadd.xlane.f32.xlu0 %v360
    %v362 = vpop.xlane.xlu0 %361
    %v363 = vrcp.pop %v359
    %v364 = vrcp.pop %v362
    %v365 = vmul.f32 %v353, %v363
    %v366 = vmul.f32 %v355, %v364
    %v367 = vpack.c.bf16 %v366, %v365
    %369 = vrot.lane.b32.xlu0 %v296, 64
    %v370 = vpop.permute.xlu0 %369
    %v372 = vsel %vm356, %v367, 0
    %v375 = vsel %vm301, %v370, 0
    %377 = vmatprep.subr.bf16.mxu0 0
    %378 = vmatpush1.bf16.msra.mxu0 %v375
    %379 = vmatprep.subr.bf16.mxu0 0
    %380 = vmatpush1.bf16.msra.mxu0 0
    %381 = vmatprep.subr.bf16.mxu0 0
    %382 = vmatpush1.bf16.msra.mxu0 0
    %383 = vmatprep.subr.bf16.mxu0 0
    %384 = vmatpush1.bf16.msra.mxu0 0
    %385 = vmatprep.subr.bf16.mxu0 0
    %386 = vmatpush1.bf16.msra.mxu0 0
    %387 = vmatprep.subr.bf16.mxu0 0
    %388 = vmatpush1.bf16.msra.mxu0 0
    %389 = vmatprep.subr.bf16.mxu0 0
    %390 = vmatpush1.bf16.msra.mxu0 0
    %391 = vmatprep.subr.bf16.mxu0 0
    %392 = vmatpush1.bf16.msra.mxu0 0
    %393 = vmatprep.subr.bf16.mxu0 0
    %394 = vmatpush1.bf16.msra.mxu0 0
    %395 = vmatprep.subr.bf16.mxu0 0
    %396 = vmatpush1.bf16.msra.mxu0 0
    %397 = vmatprep.subr.bf16.mxu0 0
    %398 = vmatpush1.bf16.msra.mxu0 0
    %399 = vmatprep.subr.bf16.mxu0 0
    %400 = vmatpush1.bf16.msra.mxu0 0
    %401 = vmatprep.subr.bf16.mxu0 0
    %402 = vmatpush1.bf16.msra.mxu0 0
    %403 = vmatprep.subr.bf16.mxu0 0
    %404 = vmatpush1.bf16.msra.mxu0 0
    %405 = vmatprep.subr.bf16.mxu0 0
    %406 = vmatpush1.bf16.msra.mxu0 0
    %407 = vmatprep.subr.bf16.mxu0 0
    %408 = vmatpush1.bf16.msra.mxu0 0
    %409 = vmatprep.mubr.bf16.mxu0 0
    %410 = vmatmul.mubr.bf16.gmra.mrb[0].mxu0 %v372
    %v411 = vpop.f32.mrb[0].mxu0
    %v412 = vadd.f32 0.0, %v411
    %v413 = vpop.f32.mrb[0].mxu0
    %v414 = vpop.f32.mrb[0].mxu0
    %v415 = vadd.f32 0.0, %v414
    %v416 = vpop.f32.mrb[0].mxu0
    %417 = vdwg.mxu0
    %419 = vrot.lane.b32.xlu0 %v415, 32
    %v420 = vpop.permute.xlu0 %419
    %v422 = vsel %vm305, %v412, %v420
    %424 = vrot.lane.b32.xlu0 %v304, 64
    %v425 = vpop.permute.xlu0 %424
    %426 = vrot.lane.b32.xlu0 %v296, 96
    %v427 = vpop.permute.xlu0 %426
    %v429 = vsel %vm305, %v425, 0
    %v432 = vsel %vm305, %v427, 0
    %434 = vmatprep.subr.bf16.mxu0 0
    %435 = vmatpush1.bf16.xpose.msra.mxu0 %v432
    %436 = vmatprep.subr.bf16.mxu0 0
    %437 = vmatpush1.bf16.xpose.msra.mxu0 0
    %438 = vmatprep.subr.bf16.mxu0 0
    %439 = vmatpush1.bf16.xpose.msra.mxu0 0
    %440 = vmatprep.subr.bf16.mxu0 0
    %441 = vmatpush1.bf16.xpose.msra.mxu0 0
    %442 = vmatprep.subr.bf16.mxu0 0
    %443 = vmatpush1.bf16.xpose.msra.mxu0 0
    %444 = vmatprep.subr.bf16.mxu0 0
    %445 = vmatpush1.bf16.xpose.msra.mxu0 0
    %446 = vmatprep.subr.bf16.mxu0 0
    %447 = vmatpush1.bf16.xpose.msra.mxu0 0
    %448 = vmatprep.subr.bf16.mxu0 0
    %449 = vmatpush1.bf16.xpose.msra.mxu0 0
    %450 = vmatprep.subr.bf16.mxu0 0
    %451 = vmatpush1.bf16.xpose.msra.mxu0 0
    %452 = vmatprep.subr.bf16.mxu0 0
    %453 = vmatpush1.bf16.xpose.msra.mxu0 0
    %454 = vmatprep.subr.bf16.mxu0 0
    %455 = vmatpush1.bf16.xpose.msra.mxu0 0
    %456 = vmatprep.subr.bf16.mxu0 0
    %457 = vmatpush1.bf16.xpose.msra.mxu0 0
    %458 = vmatprep.subr.bf16.mxu0 0
    %459 = vmatpush1.bf16.xpose.msra.mxu0 0
    %460 = vmatprep.subr.bf16.mxu0 0
    %461 = vmatpush1.bf16.xpose.msra.mxu0 0
    %462 = vmatprep.subr.bf16.mxu0 0
    %463 = vmatpush1.bf16.xpose.msra.mxu0 0
    %464 = vmatprep.subr.bf16.mxu0 0
    %465 = vmatpush1.bf16.xpose.msra.mxu0 0
    %466 = vmatprep.mubr.bf16.mxu0 0
    %467 = vmatmul.mubr.bf16.gmra.mrb[0].mxu0 %v429
    %v468 = vpop.f32.mrb[0].mxu0
    %v469 = vadd.f32 %v112, %v468
    %v470 = vpop.f32.mrb[0].mxu0
    %v471 = vpop.f32.mrb[0].mxu0
    %v472 = vadd.f32 %v113, %v471
    %v473 = vpop.f32.mrb[0].mxu0
    %474 = vdwg.mxu0
    %v475 = vmul.f32 %v469, 1.442695
    %v476 = vpow.pop %v475
    %v477 = vmul.f32 %v472, 1.442695
    %v478 = vpow.pop %v477
    %v479 = vsel %vm356, %v476, 0.0
    %480 = vadd.xlane.f32.xlu0 %v479
    %v481 = vpop.xlane.xlu0 %480
    %v482 = vsel %vm356, %v478, 0.0
    %483 = vadd.xlane.f32.xlu0 %v482
    %v484 = vpop.xlane.xlu0 %483
    %v485 = vrcp.pop %v481
    %v486 = vrcp.pop %v484
    %v487 = vmul.f32 %v476, %v485
    %v488 = vmul.f32 %v478, %v486
    %v489 = vpack.c.bf16 %v488, %v487
    %490 = vrot.lane.b32.xlu0 %v296, 32
    %v491 = vpop.permute.xlu0 %490
    %v493 = vsel %vm356, %v489, 0
    %v496 = vsel %vm301, %v491, 0
    %498 = vmatprep.subr.bf16.mxu0 0
    %499 = vmatpush1.bf16.msra.mxu0 %v496
    %500 = vmatprep.subr.bf16.mxu0 0
    %501 = vmatpush1.bf16.msra.mxu0 0
    %502 = vmatprep.subr.bf16.mxu0 0
    %503 = vmatpush1.bf16.msra.mxu0 0
    %504 = vmatprep.subr.bf16.mxu0 0
    %505 = vmatpush1.bf16.msra.mxu0 0
    %506 = vmatprep.subr.bf16.mxu0 0
    %507 = vmatpush1.bf16.msra.mxu0 0
    %508 = vmatprep.subr.bf16.mxu0 0
    %509 = vmatpush1.bf16.msra.mxu0 0
    %510 = vmatprep.subr.bf16.mxu0 0
    %511 = vmatpush1.bf16.msra.mxu0 0
    %512 = vmatprep.subr.bf16.mxu0 0
    %513 = vmatpush1.bf16.msra.mxu0 0
    %514 = vmatprep.subr.bf16.mxu0 0
    %515 = vmatpush1.bf16.msra.mxu0 0
    %516 = vmatprep.subr.bf16.mxu0 0
    %517 = vmatpush1.bf16.msra.mxu0 0
    %518 = vmatprep.subr.bf16.mxu0 0
    %519 = vmatpush1.bf16.msra.mxu0 0
    %520 = vmatprep.subr.bf16.mxu0 0
    %521 = vmatpush1.bf16.msra.mxu0 0
    %522 = vmatprep.subr.bf16.mxu0 0
    %523 = vmatpush1.bf16.msra.mxu0 0
    %524 = vmatprep.subr.bf16.mxu0 0
    %525 = vmatpush1.bf16.msra.mxu0 0
    %526 = vmatprep.subr.bf16.mxu0 0
    %527 = vmatpush1.bf16.msra.mxu0 0
    %528 = vmatprep.subr.bf16.mxu0 0
    %529 = vmatpush1.bf16.msra.mxu0 0
    %530 = vmatprep.mubr.bf16.mxu0 0
    %531 = vmatmul.mubr.bf16.gmra.mrb[0].mxu0 %v493
    %v532 = vpop.f32.mrb[0].mxu0
    %v533 = vadd.f32 0.0, %v532
    %v534 = vpop.f32.mrb[0].mxu0
    %v535 = vpop.f32.mrb[0].mxu0
    %v536 = vadd.f32 0.0, %v535
    %v537 = vpop.f32.mrb[0].mxu0
    %538 = vdwg.mxu0
    %540 = vrot.lane.b32.xlu0 %v536, 32
    %v541 = vpop.permute.xlu0 %540
    %v543 = vsel %vm305, %v533, %v541
    %545 = vrot.lane.b32.xlu0 %v543, 64
    %v546 = vpop.permute.xlu0 %545
    %vm548 = vcmask 523264
    %v549 = vsel %vm548, %v422, %v546
    %v550 = vpack.c.bf16 %v549, %v549
    %v551 = vld [vmem:[#allocation7] sm:$0xf]
    %v552 = vld [vmem:[#allocation7 + $0x4] sm:$0xf]
    %v553 = vld [vmem:[#allocation7 + $0x8] sm:$0xf]
    %v554 = vld [vmem:[#allocation7 + $0xc] sm:$0xf]
    %v555 = vld [vmem:[#allocation7 + $0x10] sm:$0xf]
    %v556 = vld [vmem:[#allocation7 + $0x14] sm:$0xf]
    %v557 = vld [vmem:[#allocation7 + $0x18] sm:$0xf]
    %v558 = vld [vmem:[#allocation7 + $0x1c] sm:$0xf]
    %v559 = vld [vmem:[#allocation7 + $0x20] sm:$0xf]
    %v560 = vld [vmem:[#allocation7 + $0x24] sm:$0xf]
    %v561 = vld [vmem:[#allocation7 + $0x28] sm:$0xf]
    %v562 = vld [vmem:[#allocation7 + $0x2c] sm:$0xf]
    %v563 = vld [vmem:[#allocation7 + $0x30] sm:$0xf]
    %v564 = vld [vmem:[#allocation7 + $0x34] sm:$0xf]
    %v565 = vld [vmem:[#allocation7 + $0x38] sm:$0xf]
    %v566 = vld [vmem:[#allocation7 + $0x3c] sm:$0xf]
    %v583 = vunpack.c.l.b16 %v551
    %v584 = vunpack.c.l.b16 %v552
    %v585 = vunpack.c.l.b16 %v553
    %v586 = vunpack.c.l.b16 %v554
    %v587 = vunpack.c.l.b16 %v555
    %v588 = vunpack.c.l.b16 %v556
    %v589 = vunpack.c.l.b16 %v557
    %v590 = vunpack.c.l.b16 %v558
    %v591 = vunpack.c.l.b16 %v559
    %v592 = vunpack.c.l.b16 %v560
    %v593 = vunpack.c.l.b16 %v561
    %v594 = vunpack.c.l.b16 %v562
    %v595 = vunpack.c.l.b16 %v563
    %v596 = vunpack.c.l.b16 %v564
    %v597 = vunpack.c.l.b16 %v565
    %v598 = vunpack.c.l.b16 %v566
    %v599 = vpack.c.b16 %v584, %v583
    %v600 = vpack.c.b16 %v586, %v585
    %v601 = vpack.c.b16 %v588, %v587
    %v602 = vpack.c.b16 %v590, %v589
    %v603 = vpack.c.b16 %v592, %v591
    %v604 = vpack.c.b16 %v594, %v593
    %v605 = vpack.c.b16 %v596, %v595
    %v606 = vpack.c.b16 %v598, %v597
    %615 = vmatprep.subr.bf16.mxu0 0
    %616 = vmatpush1.bf16.msra.mxu0 %v599
    %617 = vmatprep.subr.bf16.mxu0 0
    %618 = vmatpush1.bf16.msra.mxu0 %v600
    %619 = vmatprep.subr.bf16.mxu0 0
    %620 = vmatpush1.bf16.msra.mxu0 %v601
    %621 = vmatprep.subr.bf16.mxu0 0
    %622 = vmatpush1.bf16.msra.mxu0 %v602
    %623 = vmatprep.subr.bf16.mxu0 0
    %624 = vmatpush1.bf16.msra.mxu0 %v603
    %625 = vmatprep.subr.bf16.mxu0 0
    %626 = vmatpush1.bf16.msra.mxu0 %v604
    %627 = vmatprep.subr.bf16.mxu0 0
    %628 = vmatpush1.bf16.msra.mxu0 %v605
    %629 = vmatprep.subr.bf16.mxu0 0
    %630 = vmatpush1.bf16.msra.mxu0 %v606
    %631 = vmatprep.subr.bf16.mxu0 0
    %632 = vmatpush1.bf16.msra.mxu0 0
    %633 = vmatprep.subr.bf16.mxu0 0
    %634 = vmatpush1.bf16.msra.mxu0 0
    %635 = vmatprep.subr.bf16.mxu0 0
    %636 = vmatpush1.bf16.msra.mxu0 0
    %637 = vmatprep.subr.bf16.mxu0 0
    %638 = vmatpush1.bf16.msra.mxu0 0
    %639 = vmatprep.subr.bf16.mxu0 0
    %640 = vmatpush1.bf16.msra.mxu0 0
    %641 = vmatprep.subr.bf16.mxu0 0
    %642 = vmatpush1.bf16.msra.mxu0 0
    %643 = vmatprep.subr.bf16.mxu0 0
    %644 = vmatpush1.bf16.msra.mxu0 0
    %645 = vmatprep.subr.bf16.mxu0 0
    %646 = vmatpush1.bf16.msra.mxu0 0
    %647 = vmatprep.mubr.bf16.mxu0 0
    %648 = vmatmul.mubr.bf16.gmra.mrb[0].mxu0 %v550
    %v649 = vpop.f32.mrb[0].mxu0
    %v650 = vadd.f32 0.0, %v649
    %v651 = vpop.f32.mrb[0].mxu0
    %v652 = vpop.f32.mrb[0].mxu0
    %v653 = vpop.f32.mrb[0].mxu0
    %654 = vdwg.mxu0
    %v655 = vpack.c.bf16 %v650, %v650
    %v656 = vadd.bf16 %v114, %v655
    %v657 = vunpack.c.l.bf16 %v656
    %v658 = vld [vmem:[%s6] sm:$0x1]
    %v659 = vmul.f32 %v657, %v657
    %660 = vadd.xlane.f32.xlu0 %v659
    %v661 = vpop.xlane.xlu0 %660
    %v662 = vmul.f32 %v661, %v120
    %v663 = vadd.f32 %v662, 1e-05
    %v664 = vrsqrt.pop %v663
    %v665 = vmul.f32 %v657, %v664
    %v666 = vunpack.c.l.bf16 %v658
    %v667 = vlaneseq
    %v668 = vshrl.u32 %v667, 7
    %v669 = vsub.s32 0, %v668
    %v670 = vrot.slane %v666, %v669
    %v671 = vmul.f32 %v665, %v670
    %v672 = vpack.c.bf16 %v671, %v671
    %v673 = vld [vmem:[#allocation8] sm:$0xff]
    %v674 = vld [vmem:[#allocation8 + $0x8] sm:$0xff]
    %v675 = vld [vmem:[#allocation8 + $0x10] sm:$0xff]
    %v676 = vld [vmem:[#allocation8 + $0x18] sm:$0xff]
    %v677 = vld [vmem:[#allocation8 + $0x20] sm:$0xff]
    %v678 = vld [vmem:[#allocation8 + $0x28] sm:$0xff]
    %v679 = vld [vmem:[#allocation8 + $0x30] sm:$0xff]
    %v680 = vld [vmem:[#allocation8 + $0x38] sm:$0xff]
    %v681 = vld [vmem:[#allocation8 + $0x40] sm:$0xff]
    %v682 = vld [vmem:[#allocation8 + $0x48] sm:$0xff]
    %v683 = vld [vmem:[#allocation8 + $0x50] sm:$0xff]
    %v684 = vld [vmem:[#allocation8 + $0x58] sm:$0xff]
    %v685 = vld [vmem:[#allocation8 + $0x60] sm:$0xff]
    %v686 = vld [vmem:[#allocation8 + $0x68] sm:$0xff]
    %v687 = vld [vmem:[#allocation8 + $0x70] sm:$0xff]
    %v688 = vld [vmem:[#allocation8 + $0x78] sm:$0xff]
    %v689 = vld [vmem:[#allocation8 + $0x80] sm:$0xff]
    %v690 = vld [vmem:[#allocation8 + $0x88] sm:$0xff]
    %v691 = vld [vmem:[#allocation8 + $0x90] sm:$0xff]
    %v692 = vld [vmem:[#allocation8 + $0x98] sm:$0xff]
    %v693 = vld [vmem:[#allocation8 + $0xa0] sm:$0xff]
    %v694 = vld [vmem:[#allocation8 + $0xa8] sm:$0xff]
    %v695 = vld [vmem:[#allocation8 + $0xb0] sm:$0xff]
    %v696 = vld [vmem:[#allocation8 + $0xb8] sm:$0xff]
    %v697 = vld [vmem:[#allocation8 + $0xc0] sm:$0xff]
    %v698 = vld [vmem:[#allocation8 + $0xc8] sm:$0xff]
    %v699 = vld [vmem:[#allocation8 + $0xd0] sm:$0xff]
    %v700 = vld [vmem:[#allocation8 + $0xd8] sm:$0xff]
    %v701 = vld [vmem:[#allocation8 + $0xe0] sm:$0xff]
    %v702 = vld [vmem:[#allocation8 + $0xe8] sm:$0xff]
    %v703 = vld [vmem:[#allocation8 + $0xf0] sm:$0xff]
    %v704 = vld [vmem:[#allocation8 + $0xf8] sm:$0xff]
    %v737 = vunpack.c.l.b16 %v673
    %v738 = vunpack.c.h.b16 %v673
    %v739 = vunpack.c.l.b16 %v674
    %v740 = vunpack.c.h.b16 %v674
    %v741 = vunpack.c.l.b16 %v675
    %v742 = vunpack.c.h.b16 %v675
    %v743 = vunpack.c.l.b16 %v676
    %v744 = vunpack.c.h.b16 %v676
    %v745 = vunpack.c.l.b16 %v677
    %v746 = vunpack.c.h.b16 %v677
    %v747 = vunpack.c.l.b16 %v678
    %v748 = vunpack.c.h.b16 %v678
    %v749 = vunpack.c.l.b16 %v679
    %v750 = vunpack.c.h.b16 %v679
    %v751 = vunpack.c.l.b16 %v680
    %v752 = vunpack.c.h.b16 %v680
    %v753 = vunpack.c.l.b16 %v681
    %v754 = vunpack.c.h.b16 %v681
    %v755 = vunpack.c.l.b16 %v682
    %v756 = vunpack.c.h.b16 %v682
    %v757 = vunpack.c.l.b16 %v683
    %v758 = vunpack.c.h.b16 %v683
    %v759 = vunpack.c.l.b16 %v684
    %v760 = vunpack.c.h.b16 %v684
    %v761 = vunpack.c.l.b16 %v685
    %v762 = vunpack.c.h.b16 %v685
    %v763 = vunpack.c.l.b16 %v686
    %v764 = vunpack.c.h.b16 %v686
    %v765 = vunpack.c.l.b16 %v687
    %v766 = vunpack.c.h.b16 %v687
    %v767 = vunpack.c.l.b16 %v688
    %v768 = vunpack.c.h.b16 %v688
    %v769 = vunpack.c.l.b16 %v689
    %v770 = vunpack.c.h.b16 %v689
    %v771 = vunpack.c.l.b16 %v690
    %v772 = vunpack.c.h.b16 %v690
    %v773 = vunpack.c.l.b16 %v691
    %v774 = vunpack.c.h.b16 %v691
    %v775 = vunpack.c.l.b16 %v692
    %v776 = vunpack.c.h.b16 %v692
    %v777 = vunpack.c.l.b16 %v693
    %v778 = vunpack.c.h.b16 %v693
    %v779 = vunpack.c.l.b16 %v694
    %v780 = vunpack.c.h.b16 %v694
    %v781 = vunpack.c.l.b16 %v695
    %v782 = vunpack.c.h.b16 %v695
    %v783 = vunpack.c.l.b16 %v696
    %v784 = vunpack.c.h.b16 %v696
    %v785 = vunpack.c.l.b16 %v697
    %v786 = vunpack.c.h.b16 %v697
    %v787 = vunpack.c.l.b16 %v698
    %v788 = vunpack.c.h.b16 %v698
    %v789 = vunpack.c.l.b16 %v699
    %v790 = vunpack.c.h.b16 %v699
    %v791 = vunpack.c.l.b16 %v700
    %v792 = vunpack.c.h.b16 %v700
    %v793 = vunpack.c.l.b16 %v701
    %v794 = vunpack.c.h.b16 %v701
    %v795 = vunpack.c.l.b16 %v702
    %v796 = vunpack.c.h.b16 %v702
    %v797 = vunpack.c.l.b16 %v703
    %v798 = vunpack.c.h.b16 %v703
    %v799 = vunpack.c.l.b16 %v704
    %v800 = vunpack.c.h.b16 %v704
    %v801 = vpack.c.b16 %v741, %v737
    %v802 = vpack.c.b16 %v742, %v738
    %v803 = vpack.c.b16 %v743, %v739
    %v804 = vpack.c.b16 %v744, %v740
    %v805 = vpack.c.b16 %v749, %v745
    %v806 = vpack.c.b16 %v750, %v746
    %v807 = vpack.c.b16 %v751, %v747
    %v808 = vpack.c.b16 %v752, %v748
    %v809 = vpack.c.b16 %v757, %v753
    %v810 = vpack.c.b16 %v758, %v754
    %v811 = vpack.c.b16 %v759, %v755
    %v812 = vpack.c.b16 %v760, %v756
    %v813 = vpack.c.b16 %v765, %v761
    %v814 = vpack.c.b16 %v766, %v762
    %v815 = vpack.c.b16 %v767, %v763
    %v816 = vpack.c.b16 %v768, %v764
    %v817 = vpack.c.b16 %v773, %v769
    %v818 = vpack.c.b16 %v774, %v770
    %v819 = vpack.c.b16 %v775, %v771
    %v820 = vpack.c.b16 %v776, %v772
    %v821 = vpack.c.b16 %v781, %v777
    %v822 = vpack.c.b16 %v782, %v778
    %v823 = vpack.c.b16 %v783, %v779
    %v824 = vpack.c.b16 %v784, %v780
    %v825 = vpack.c.b16 %v789, %v785
    %v826 = vpack.c.b16 %v790, %v786
    %v827 = vpack.c.b16 %v791, %v787
    %v828 = vpack.c.b16 %v792, %v788
    %v829 = vpack.c.b16 %v797, %v793
    %v830 = vpack.c.b16 %v798, %v794
    %v831 = vpack.c.b16 %v799, %v795
    %v832 = vpack.c.b16 %v800, %v796
    %865 = vmatprep.subr.bf16.mxu0 %v802
    %866 = vmatpush1.bf16.msra.mxu0 %v801
    %867 = vmatprep.subr.bf16.mxu0 %v806
    %868 = vmatpush1.bf16.msra.mxu0 %v805
    %869 = vmatprep.subr.bf16.mxu0 %v810
    %870 = vmatpush1.bf16.msra.mxu0 %v809
    %871 = vmatprep.subr.bf16.mxu0 %v814
    %872 = vmatpush1.bf16.msra.mxu0 %v813
    %873 = vmatprep.subr.bf16.mxu0 %v818
    %874 = vmatpush1.bf16.msra.mxu0 %v817
    %875 = vmatprep.subr.bf16.mxu0 %v822
    %876 = vmatpush1.bf16.msra.mxu0 %v821
    %877 = vmatprep.subr.bf16.mxu0 %v826
    %878 = vmatpush1.bf16.msra.mxu0 %v825
    %879 = vmatprep.subr.bf16.mxu0 %v830
    %880 = vmatpush1.bf16.msra.mxu0 %v829
    %881 = vmatprep.subr.bf16.mxu0 0
    %882 = vmatpush1.bf16.msra.mxu0 0
    %883 = vmatprep.subr.bf16.mxu0 0
    %884 = vmatpush1.bf16.msra.mxu0 0
    %885 = vmatprep.subr.bf16.mxu0 0
    %886 = vmatpush1.bf16.msra.mxu0 0
    %887 = vmatprep.subr.bf16.mxu0 0
    %888 = vmatpush1.bf16.msra.mxu0 0
    %889 = vmatprep.subr.bf16.mxu0 0
    %890 = vmatpush1.bf16.msra.mxu0 0
    %891 = vmatprep.subr.bf16.mxu0 0
    %892 = vmatpush1.bf16.msra.mxu0 0
    %893 = vmatprep.subr.bf16.mxu0 0
    %894 = vmatpush1.bf16.msra.mxu0 0
    %895 = vmatprep.subr.bf16.mxu0 0
    %896 = vmatpush1.bf16.msra.mxu0 0
    %897 = vmatprep.mubr.bf16.mxu0 0
    %898 = vmatmul.mubr.bf16.gmra.mrb[0].mxu0 %v672
    %v899 = vpop.f32.mrb[0].mxu0
    %v900 = vadd.f32 0.0, %v899
    %v901 = vpop.f32.mrb[0].mxu0
    %v902 = vadd.f32 0.0, %v901
    %v903 = vpop.f32.mrb[0].mxu0
    %v904 = vpop.f32.mrb[0].mxu0
    %905 = vdwg.mxu0
    %906 = vmatprep.subr.bf16.mxu0 %v804
    %907 = vmatpush1.bf16.msra.mxu0 %v803
    %908 = vmatprep.subr.bf16.mxu0 %v808
    %909 = vmatpush1.bf16.msra.mxu0 %v807
    %910 = vmatprep.subr.bf16.mxu0 %v812
    %911 = vmatpush1.bf16.msra.mxu0 %v811
    %912 = vmatprep.subr.bf16.mxu0 %v816
    %913 = vmatpush1.bf16.msra.mxu0 %v815
    %914 = vmatprep.subr.bf16.mxu0 %v820
    %915 = vmatpush1.bf16.msra.mxu0 %v819
    %916 = vmatprep.subr.bf16.mxu0 %v824
    %917 = vmatpush1.bf16.msra.mxu0 %v823
    %918 = vmatprep.subr.bf16.mxu0 %v828
    %919 = vmatpush1.bf16.msra.mxu0 %v827
    %920 = vmatprep.subr.bf16.mxu0 %v832
    %921 = vmatpush1.bf16.msra.mxu0 %v831
    %922 = vmatprep.subr.bf16.mxu0 0
    %923 = vmatpush1.bf16.msra.mxu0 0
    %924 = vmatprep.subr.bf16.mxu0 0
    %925 = vmatpush1.bf16.msra.mxu0 0
    %926 = vmatprep.subr.bf16.mxu0 0
    %927 = vmatpush1.bf16.msra.mxu0 0
    %928 = vmatprep.subr.bf16.mxu0 0
    %929 = vmatpush1.bf16.msra.mxu0 0
    %930 = vmatprep.subr.bf16.mxu0 0
    %931 = vmatpush1.bf16.msra.mxu0 0
    %932 = vmatprep.subr.bf16.mxu0 0
    %933 = vmatpush1.bf16.msra.mxu0 0
    %934 = vmatprep.subr.bf16.mxu0 0
    %935 = vmatpush1.bf16.msra.mxu0 0
    %936 = vmatprep.subr.bf16.mxu0 0
    %937 = vmatpush1.bf16.msra.mxu0 0
    %938 = vmatprep.mubr.bf16.mxu0 0
    %939 = vmatmul.mubr.bf16.gmra.mrb[0].mxu0 %v672
    %v940 = vpop.f32.mrb[0].mxu0
    %v941 = vadd.f32 0.0, %v940
    %v942 = vpop.f32.mrb[0].mxu0
    %v943 = vadd.f32 0.0, %v942
    %v944 = vpop.f32.mrb[0].mxu0
    %v945 = vpop.f32.mrb[0].mxu0
    %946 = vdwg.mxu0
    %v947 = vxor.u32 %v900, 2147483648
    %v948 = vxor.u32 %v902, 2147483648
    %v949 = vmul.f32 %v947, 1.442695
    %v950 = vpow.pop %v949
    %v951 = vmul.f32 %v948, 1.442695
    %v952 = vpow.pop %v951
    %v953 = vadd.f32 %v950, 1.0
    %v954 = vadd.f32 %v952, 1.0
    %v955 = vrcp.pop %v953
    %v956 = vmul.f32 1.0, %v955
    %v957 = vrcp.pop %v954
    %v958 = vmul.f32 1.0, %v957
    %v959 = vmul.f32 %v900, %v956
    %v960 = vmul.f32 %v902, %v958
    %v961 = vmul.f32 %v959, %v941
    %v962 = vmul.f32 %v960, %v943
    %v963 = vpack.c.bf16 %v961, %v961
    %v964 = vpack.c.bf16 %v962, %v962
    %v965 = vld [vmem:[#allocation10] sm:$0xf]
    %v966 = vld [vmem:[#allocation10 + $0x4] sm:$0xf]
    %v967 = vld [vmem:[#allocation10 + $0x8] sm:$0xf]
    %v968 = vld [vmem:[#allocation10 + $0xc] sm:$0xf]
    %v969 = vld [vmem:[#allocation10 + $0x10] sm:$0xf]
    %v970 = vld [vmem:[#allocation10 + $0x14] sm:$0xf]
    %v971 = vld [vmem:[#allocation10 + $0x18] sm:$0xf]
    %v972 = vld [vmem:[#allocation10 + $0x1c] sm:$0xf]
    %v973 = vld [vmem:[#allocation10 + $0x20] sm:$0xf]
    %v974 = vld [vmem:[#allocation10 + $0x24] sm:$0xf]
    %v975 = vld [vmem:[#allocation10 + $0x28] sm:$0xf]
    %v976 = vld [vmem:[#allocation10 + $0x2c] sm:$0xf]
    %v977 = vld [vmem:[#allocation10 + $0x30] sm:$0xf]
    %v978 = vld [vmem:[#allocation10 + $0x34] sm:$0xf]
    %v979 = vld [vmem:[#allocation10 + $0x38] sm:$0xf]
    %v980 = vld [vmem:[#allocation10 + $0x3c] sm:$0xf]
    %v981 = vld [vmem:[#allocation10 + $0x40] sm:$0xf]
    %v982 = vld [vmem:[#allocation10 + $0x44] sm:$0xf]
    %v983 = vld [vmem:[#allocation10 + $0x48] sm:$0xf]
    %v984 = vld [vmem:[#allocation10 + $0x4c] sm:$0xf]
    %v985 = vld [vmem:[#allocation10 + $0x50] sm:$0xf]
    %v986 = vld [vmem:[#allocation10 + $0x54] sm:$0xf]
    %v987 = vld [vmem:[#allocation10 + $0x58] sm:$0xf]
    %v988 = vld [vmem:[#allocation10 + $0x5c] sm:$0xf]
    %v989 = vld [vmem:[#allocation10 + $0x60] sm:$0xf]
    %v990 = vld [vmem:[#allocation10 + $0x64] sm:$0xf]
    %v991 = vld [vmem:[#allocation10 + $0x68] sm:$0xf]
    %v992 = vld [vmem:[#allocation10 + $0x6c] sm:$0xf]
    %v993 = vld [vmem:[#allocation10 + $0x70] sm:$0xf]
    %v994 = vld [vmem:[#allocation10 + $0x74] sm:$0xf]
    %v995 = vld [vmem:[#allocation10 + $0x78] sm:$0xf]
    %v996 = vld [vmem:[#allocation10 + $0x7c] sm:$0xf]
    %v1029 = vunpack.c.l.b16 %v965
    %v1030 = vunpack.c.l.b16 %v966
    %v1031 = vunpack.c.l.b16 %v967
    %v1032 = vunpack.c.l.b16 %v968
    %v1033 = vunpack.c.l.b16 %v969
    %v1034 = vunpack.c.l.b16 %v970
    %v1035 = vunpack.c.l.b16 %v971
    %v1036 = vunpack.c.l.b16 %v972
    %v1037 = vunpack.c.l.b16 %v973
    %v1038 = vunpack.c.l.b16 %v974
    %v1039 = vunpack.c.l.b16 %v975
    %v1040 = vunpack.c.l.b16 %v976
    %v1041 = vunpack.c.l.b16 %v977
    %v1042 = vunpack.c.l.b16 %v978
    %v1043 = vunpack.c.l.b16 %v979
    %v1044 = vunpack.c.l.b16 %v980
    %v1045 = vunpack.c.l.b16 %v981
    %v1046 = vunpack.c.l.b16 %v982
    %v1047 = vunpack.c.l.b16 %v983
    %v1048 = vunpack.c.l.b16 %v984
    %v1049 = vunpack.c.l.b16 %v985
    %v1050 = vunpack.c.l.b16 %v986
    %v1051 = vunpack.c.l.b16 %v987
    %v1052 = vunpack.c.l.b16 %v988
    %v1053 = vunpack.c.l.b16 %v989
    %v1054 = vunpack.c.l.b16 %v990
    %v1055 = vunpack.c.l.b16 %v991
    %v1056 = vunpack.c.l.b16 %v992
    %v1057 = vunpack.c.l.b16 %v993
    %v1058 = vunpack.c.l.b16 %v994
    %v1059 = vunpack.c.l.b16 %v995
    %v1060 = vunpack.c.l.b16 %v996
    %v1061 = vpack.c.b16 %v1030, %v1029
    %v1062 = vpack.c.b16 %v1032, %v1031
    %v1063 = vpack.c.b16 %v1034, %v1033
    %v1064 = vpack.c.b16 %v1036, %v1035
    %v1065 = vpack.c.b16 %v1038, %v1037
    %v1066 = vpack.c.b16 %v1040, %v1039
    %v1067 = vpack.c.b16 %v1042, %v1041
    %v1068 = vpack.c.b16 %v1044, %v1043
    %v1069 = vpack.c.b16 %v1046, %v1045
    %v1070 = vpack.c.b16 %v1048, %v1047
    %v1071 = vpack.c.b16 %v1050, %v1049
    %v1072 = vpack.c.b16 %v1052, %v1051
    %v1073 = vpack.c.b16 %v1054, %v1053
    %v1074 = vpack.c.b16 %v1056, %v1055
    %v1075 = vpack.c.b16 %v1058, %v1057
    %v1076 = vpack.c.b16 %v1060, %v1059
    %1093 = vmatprep.subr.bf16.mxu0 0
    %1094 = vmatpush1.bf16.msra.mxu0 %v1061
    %1095 = vmatprep.subr.bf16.mxu0 0
    %1096 = vmatpush1.bf16.msra.mxu0 %v1062
    %1097 = vmatprep.subr.bf16.mxu0 0
    %1098 = vmatpush1.bf16.msra.mxu0 %v1063
    %1099 = vmatprep.subr.bf16.mxu0 0
    %1100 = vmatpush1.bf16.msra.mxu0 %v1064
    %1101 = vmatprep.subr.bf16.mxu0 0
    %1102 = vmatpush1.bf16.msra.mxu0 %v1065
    %1103 = vmatprep.subr.bf16.mxu0 0
    %1104 = vmatpush1.bf16.msra.mxu0 %v1066
    %1105 = vmatprep.subr.bf16.mxu0 0
    %1106 = vmatpush1.bf16.msra.mxu0 %v1067
    %1107 = vmatprep.subr.bf16.mxu0 0
    %1108 = vmatpush1.bf16.msra.mxu0 %v1068
    %1109 = vmatprep.subr.bf16.mxu0 0
    %1110 = vmatpush1.bf16.msra.mxu0 %v1069
    %1111 = vmatprep.subr.bf16.mxu0 0
    %1112 = vmatpush1.bf16.msra.mxu0 %v1070
    %1113 = vmatprep.subr.bf16.mxu0 0
    %1114 = vmatpush1.bf16.msra.mxu0 %v1071
    %1115 = vmatprep.subr.bf16.mxu0 0
    %1116 = vmatpush1.bf16.msra.mxu0 %v1072
    %1117 = vmatprep.subr.bf16.mxu0 0
    %1118 = vmatpush1.bf16.msra.mxu0 %v1073
    %1119 = vmatprep.subr.bf16.mxu0 0
    %1120 = vmatpush1.bf16.msra.mxu0 %v1074
    %1121 = vmatprep.subr.bf16.mxu0 0
    %1122 = vmatpush1.bf16.msra.mxu0 %v1075
    %1123 = vmatprep.subr.bf16.mxu0 0
    %1124 = vmatpush1.bf16.msra.mxu0 %v1076
    %1125 = vmatprep.mubr.bf16.mxu0 %v964
    %1126 = vmatmul.mubr.bf16.gmra.mrb[0].mxu0 %v963
    %v1127 = vpop.f32.mrb[0].mxu0
    %v1128 = vadd.f32 0.0, %v1127
    %v1129 = vpop.f32.mrb[0].mxu0
    %v1130 = vpop.f32.mrb[0].mxu0
    %v1131 = vpop.f32.mrb[0].mxu0
    %1132 = vdwg.mxu0
    %v1133 = vpack.c.bf16 %v1128, %v1128
    %v1134 = vadd.bf16 %v656, %v1133
    %v1138 = vunpack.c.l.b16 %v655
    %v1139 = vunpack.c.l.b16 %v1133
    %v1140 = vunpack.c.l.b16 %v1134
    %v1141 = vpack.c.b16 %v1139, %v1138
    %v1142 = vpack.c.b16 %v1140, %v1140
    %1145 = vst [vmem:[#allocation11] sm:$0xff] %v1141
    %1146 = vst [vmem:[#allocation11 + $0x8] sm:$0xf] %v1142
    %v1147 = vunpack.c.l.bf16 %v1134
    %s1148 = scalar_lea.vmem %s5, 1
    %v1149 = vld [vmem:[%s1148] sm:$0x1]
    %v1150 = vmul.f32 %v1147, %v1147
    %1151 = vadd.xlane.f32.xlu0 %v1150
    %v1152 = vpop.xlane.xlu0 %1151
    %v1153 = vmul.f32 %v1152, %v120
    %v1154 = vadd.f32 %v1153, 1e-05
    %v1155 = vrsqrt.pop %v1154
    %v1156 = vmul.f32 %v1147, %v1155
    %v1157 = vunpack.c.l.bf16 %v1149
    %v1158 = vlaneseq
    %v1159 = vshrl.u32 %v1158, 7
    %v1160 = vsub.s32 0, %v1159
    %v1161 = vrot.slane %v1157, %v1160
    %v1162 = vmul.f32 %v1156, %v1161
    %v1163 = vpack.c.bf16 %v1162, %v1162
    %s1164 = scalar_lea.vmem [#allocation5], 128
    %v1165 = vld [vmem:[%s1164] sm:$0xff]
    %v1166 = vld [vmem:[%s1164 + $0x8] sm:$0xff]
    %v1167 = vld [vmem:[%s1164 + $0x10] sm:$0xff]
    %v1168 = vld [vmem:[%s1164 + $0x18] sm:$0xff]
    %v1169 = vld [vmem:[%s1164 + $0x20] sm:$0xff]
    %v1170 = vld [vmem:[%s1164 + $0x28] sm:$0xff]
    %v1171 = vld [vmem:[%s1164 + $0x30] sm:$0xff]
    %v1172 = vld [vmem:[%s1164 + $0x38] sm:$0xff]
    %v1173 = vld [vmem:[%s1164 + $0x40] sm:$0xff]
    %v1174 = vld [vmem:[%s1164 + $0x48] sm:$0xff]
    %v1175 = vld [vmem:[%s1164 + $0x50] sm:$0xff]
    %v1176 = vld [vmem:[%s1164 + $0x58] sm:$0xff]
    %v1177 = vld [vmem:[%s1164 + $0x60] sm:$0xff]
    %v1178 = vld [vmem:[%s1164 + $0x68] sm:$0xff]
    %v1179 = vld [vmem:[%s1164 + $0x70] sm:$0xff]
    %v1180 = vld [vmem:[%s1164 + $0x78] sm:$0xff]
    %v1197 = vunpack.c.l.b16 %v1165
    %v1198 = vunpack.c.h.b16 %v1165
    %v1199 = vunpack.c.l.b16 %v1166
    %v1200 = vunpack.c.h.b16 %v1166
    %v1201 = vunpack.c.l.b16 %v1167
    %v1202 = vunpack.c.h.b16 %v1167
    %v1203 = vunpack.c.l.b16 %v1168
    %v1204 = vunpack.c.h.b16 %v1168
    %v1205 = vunpack.c.l.b16 %v1169
    %v1206 = vunpack.c.h.b16 %v1169
    %v1207 = vunpack.c.l.b16 %v1170
    %v1208 = vunpack.c.h.b16 %v1170
    %v1209 = vunpack.c.l.b16 %v1171
    %v1210 = vunpack.c.h.b16 %v1171
    %v1211 = vunpack.c.l.b16 %v1172
    %v1212 = vunpack.c.h.b16 %v1172
    %v1213 = vunpack.c.l.b16 %v1173
    %v1214 = vunpack.c.h.b16 %v1173
    %v1215 = vunpack.c.l.b16 %v1174
    %v1216 = vunpack.c.h.b16 %v1174
    %v1217 = vunpack.c.l.b16 %v1175
    %v1218 = vunpack.c.h.b16 %v1175
    %v1219 = vunpack.c.l.b16 %v1176
    %v1220 = vunpack.c.h.b16 %v1176
    %v1221 = vunpack.c.l.b16 %v1177
    %v1222 = vunpack.c.h.b16 %v1177
    %v1223 = vunpack.c.l.b16 %v1178
    %v1224 = vunpack.c.h.b16 %v1178
    %v1225 = vunpack.c.l.b16 %v1179
    %v1226 = vunpack.c.h.b16 %v1179
    %v1227 = vunpack.c.l.b16 %v1180
    %v1228 = vunpack.c.h.b16 %v1180
    %v1229 = vpack.c.b16 %v1199, %v1197
    %v1230 = vpack.c.b16 %v1200, %v1198
    %v1231 = vpack.c.b16 %v1203, %v1201
    %v1232 = vpack.c.b16 %v1204, %v1202
    %v1233 = vpack.c.b16 %v1207, %v1205
    %v1234 = vpack.c.b16 %v1208, %v1206
    %v1235 = vpack.c.b16 %v1211, %v1209
    %v1236 = vpack.c.b16 %v1212, %v1210
    %v1237 = vpack.c.b16 %v1215, %v1213
    %v1238 = vpack.c.b16 %v1216, %v1214
    %v1239 = vpack.c.b16 %v1219, %v1217
    %v1240 = vpack.c.b16 %v1220, %v1218
    %v1241 = vpack.c.b16 %v1223, %v1221
    %v1242 = vpack.c.b16 %v1224, %v1222
    %v1243 = vpack.c.b16 %v1227, %v1225
    %v1244 = vpack.c.b16 %v1228, %v1226
    %1261 = vmatprep.subr.bf16.mxu0 %v1230
    %1262 = vmatpush1.bf16.msra.mxu0 %v1229
    %1263 = vmatprep.subr.bf16.mxu0 %v1232
    %1264 = vmatpush1.bf16.msra.mxu0 %v1231
    %1265 = vmatprep.subr.bf16.mxu0 %v1234
    %1266 = vmatpush1.bf16.msra.mxu0 %v1233
    %1267 = vmatprep.subr.bf16.mxu0 %v1236
    %1268 = vmatpush1.bf16.msra.mxu0 %v1235
    %1269 = vmatprep.subr.bf16.mxu0 %v1238
    %1270 = vmatpush1.bf16.msra.mxu0 %v1237
    %1271 = vmatprep.subr.bf16.mxu0 %v1240
    %1272 = vmatpush1.bf16.msra.mxu0 %v1239
    %1273 = vmatprep.subr.bf16.mxu0 %v1242
    %1274 = vmatpush1.bf16.msra.mxu0 %v1241
    %1275 = vmatprep.subr.bf16.mxu0 %v1244
    %1276 = vmatpush1.bf16.msra.mxu0 %v1243
    %1277 = vmatprep.subr.bf16.mxu0 0
    %1278 = vmatpush1.bf16.msra.mxu0 0
    %1279 = vmatprep.subr.bf16.mxu0 0
    %1280 = vmatpush1.bf16.msra.mxu0 0
    %1281 = vmatprep.subr.bf16.mxu0 0
    %1282 = vmatpush1.bf16.msra.mxu0 0
    %1283 = vmatprep.subr.bf16.mxu0 0
    %1284 = vmatpush1.bf16.msra.mxu0 0
    %1285 = vmatprep.subr.bf16.mxu0 0
    %1286 = vmatpush1.bf16.msra.mxu0 0
    %1287 = vmatprep.subr.bf16.mxu0 0
    %1288 = vmatpush1.bf16.msra.mxu0 0
    %1289 = vmatprep.subr.bf16.mxu0 0
    %1290 = vmatpush1.bf16.msra.mxu0 0
    %1291 = vmatprep.subr.bf16.mxu0 0
    %1292 = vmatpush1.bf16.msra.mxu0 0
    %1293 = vmatprep.mubr.bf16.mxu0 0
    %1294 = vmatmul.mubr.bf16.gmra.mrb[0].mxu0 %v1163
    %v1295 = vpop.f32.mrb[0].mxu0
    %v1296 = vadd.f32 0.0, %v1295
    %v1297 = vpop.f32.mrb[0].mxu0
    %v1298 = vadd.f32 0.0, %v1297
    %v1299 = vpop.f32.mrb[0].mxu0
    %v1300 = vpop.f32.mrb[0].mxu0
    %1301 = vdwg.mxu0
    %v1302 = vmul.f32 %v1296, %v106
    %v1303 = vmul.f32 %v1298, %v107
    %1304 = vrot.lane.b32.xlu0 %v1296, 16
    %v1305 = vpop.permute.xlu0 %1304
    %1306 = vrot.lane.b32.xlu0 %v1298, 16
    %v1307 = vpop.permute.xlu0 %1306
    %v1308 = vsel %vm277, %v1305, %v1307
    %v1309 = vsel %vm277, %v1307, %v1305
    %v1310 = vmul.f32 %v1309, %v110
    %v1311 = vmul.f32 %v1308, %v111
    %v1312 = vadd.f32 %v1302, %v1310
    %v1313 = vadd.f32 %v1303, %v1311
    %1314 = vrot.lane.b32.xlu0 %v1296, 112
    %v1315 = vpop.permute.xlu0 %1314
    %1316 = vrot.lane.b32.xlu0 %v1298, 112
    %v1317 = vpop.permute.xlu0 %1316
    %v1318 = vsel %vm288, %v1315, %v1317
    %v1319 = vsel %vm288, %v1317, %v1315
    %v1320 = vmul.f32 %v1318, %v108
    %v1321 = vmul.f32 %v1319, %v109
    %v1322 = vadd.f32 %v1312, %v1320
    %v1323 = vadd.f32 %v1313, %v1321
    %v1324 = vpack.c.bf16 %v1322, %v1322
    %v1325 = vpack.c.bf16 %v1323, %v1323
    %v1327 = vrot.slane %v1324, 4
    %1328 = vrot.lane.b32.xlu0 %v1327, 96
    %v1329 = vpop.permute.xlu0 %1328
    %v1332 = vsel %vm301, %v1324, %v1329
    %v1333 = vsel %vm305, %v1332, 0
    %v1336 = vsel %vm305, %v1325, 0
    %1338 = vmatprep.subr.bf16.mxu0 0
    %1339 = vmatpush1.bf16.xpose.msra.mxu0 %v1336
    %1340 = vmatprep.subr.bf16.mxu0 0
    %1341 = vmatpush1.bf16.xpose.msra.mxu0 0
    %1342 = vmatprep.subr.bf16.mxu0 0
    %1343 = vmatpush1.bf16.xpose.msra.mxu0 0
    %1344 = vmatprep.subr.bf16.mxu0 0
    %1345 = vmatpush1.bf16.xpose.msra.mxu0 0
    %1346 = vmatprep.subr.bf16.mxu0 0
    %1347 = vmatpush1.bf16.xpose.msra.mxu0 0
    %1348 = vmatprep.subr.bf16.mxu0 0
    %1349 = vmatpush1.bf16.xpose.msra.mxu0 0
    %1350 = vmatprep.subr.bf16.mxu0 0
    %1351 = vmatpush1.bf16.xpose.msra.mxu0 0
    %1352 = vmatprep.subr.bf16.mxu0 0
    %1353 = vmatpush1.bf16.xpose.msra.mxu0 0
    %1354 = vmatprep.subr.bf16.mxu0 0
    %1355 = vmatpush1.bf16.xpose.msra.mxu0 0
    %1356 = vmatprep.subr.bf16.mxu0 0
    %1357 = vmatpush1.bf16.xpose.msra.mxu0 0
    %1358 = vmatprep.subr.bf16.mxu0 0
    %1359 = vmatpush1.bf16.xpose.msra.mxu0 0
    %1360 = vmatprep.subr.bf16.mxu0 0
    %1361 = vmatpush1.bf16.xpose.msra.mxu0 0
    %1362 = vmatprep.subr.bf16.mxu0 0
    %1363 = vmatpush1.bf16.xpose.msra.mxu0 0
    %1364 = vmatprep.subr.bf16.mxu0 0
    %1365 = vmatpush1.bf16.xpose.msra.mxu0 0
    %1366 = vmatprep.subr.bf16.mxu0 0
    %1367 = vmatpush1.bf16.xpose.msra.mxu0 0
    %1368 = vmatprep.subr.bf16.mxu0 0
    %1369 = vmatpush1.bf16.xpose.msra.mxu0 0
    %1370 = vmatprep.mubr.bf16.mxu0 0
    %1371 = vmatmul.mubr.bf16.gmra.mrb[0].mxu0 %v1333
    %v1372 = vpop.f32.mrb[0].mxu0
    %v1373 = vadd.f32 %v112, %v1372
    %v1374 = vpop.f32.mrb[0].mxu0
    %v1375 = vpop.f32.mrb[0].mxu0
    %v1376 = vadd.f32 %v113, %v1375
    %v1377 = vpop.f32.mrb[0].mxu0
    %1378 = vdwg.mxu0
    %v1379 = vmul.f32 %v1373, 1.442695
    %v1380 = vpow.pop %v1379
    %v1381 = vmul.f32 %v1376, 1.442695
    %v1382 = vpow.pop %v1381
    %v1383 = vsel %vm356, %v1380, 0.0
    %1384 = vadd.xlane.f32.xlu0 %v1383
    %v1385 = vpop.xlane.xlu0 %1384
    %v1386 = vsel %vm356, %v1382, 0.0
    %1387 = vadd.xlane.f32.xlu0 %v1386
    %v1388 = vpop.xlane.xlu0 %1387
    %v1389 = vrcp.pop %v1385
    %v1390 = vrcp.pop %v1388
    %v1391 = vmul.f32 %v1380, %v1389
    %v1392 = vmul.f32 %v1382, %v1390
    %v1393 = vpack.c.bf16 %v1392, %v1391
    %1395 = vrot.lane.b32.xlu0 %v1325, 64
    %v1396 = vpop.permute.xlu0 %1395
    %v1398 = vsel %vm356, %v1393, 0
    %v1401 = vsel %vm301, %v1396, 0
    %1403 = vmatprep.subr.bf16.mxu0 0
    %1404 = vmatpush1.bf16.msra.mxu0 %v1401
    %1405 = vmatprep.subr.bf16.mxu0 0
    %1406 = vmatpush1.bf16.msra.mxu0 0
    %1407 = vmatprep.subr.bf16.mxu0 0
    %1408 = vmatpush1.bf16.msra.mxu0 0
    %1409 = vmatprep.subr.bf16.mxu0 0
    %1410 = vmatpush1.bf16.msra.mxu0 0
    %1411 = vmatprep.subr.bf16.mxu0 0
    %1412 = vmatpush1.bf16.msra.mxu0 0
    %1413 = vmatprep.subr.bf16.mxu0 0
    %1414 = vmatpush1.bf16.msra.mxu0 0
    %1415 = vmatprep.subr.bf16.mxu0 0
    %1416 = vmatpush1.bf16.msra.mxu0 0
    %1417 = vmatprep.subr.bf16.mxu0 0
    %1418 = vmatpush1.bf16.msra.mxu0 0
    %1419 = vmatprep.subr.bf16.mxu0 0
    %1420 = vmatpush1.bf16.msra.mxu0 0
    %1421 = vmatprep.subr.bf16.mxu0 0
    %1422 = vmatpush1.bf16.msra.mxu0 0
    %1423 = vmatprep.subr.bf16.mxu0 0
    %1424 = vmatpush1.bf16.msra.mxu0 0
    %1425 = vmatprep.subr.bf16.mxu0 0
    %1426 = vmatpush1.bf16.msra.mxu0 0
    %1427 = vmatprep.subr.bf16.mxu0 0
    %1428 = vmatpush1.bf16.msra.mxu0 0
    %1429 = vmatprep.subr.bf16.mxu0 0
    %1430 = vmatpush1.bf16.msra.mxu0 0
    %1431 = vmatprep.subr.bf16.mxu0 0
    %1432 = vmatpush1.bf16.msra.mxu0 0
    %1433 = vmatprep.subr.bf16.mxu0 0
    %1434 = vmatpush1.bf16.msra.mxu0 0
    %1435 = vmatprep.mubr.bf16.mxu0 0
    %1436 = vmatmul.mubr.bf16.gmra.mrb[0].mxu0 %v1398
    %v1437 = vpop.f32.mrb[0].mxu0
    %v1438 = vadd.f32 0.0, %v1437
    %v1439 = vpop.f32.mrb[0].mxu0
    %v1440 = vpop.f32.mrb[0].mxu0
    %v1441 = vadd.f32 0.0, %v1440
    %v1442 = vpop.f32.mrb[0].mxu0
    %1443 = vdwg.mxu0
    %1445 = vrot.lane.b32.xlu0 %v1441, 32
    %v1446 = vpop.permute.xlu0 %1445
    %v1448 = vsel %vm305, %v1438, %v1446
    %1450 = vrot.lane.b32.xlu0 %v1332, 64
    %v1451 = vpop.permute.xlu0 %1450
    %1452 = vrot.lane.b32.xlu0 %v1325, 96
    %v1453 = vpop.permute.xlu0 %1452
    %v1455 = vsel %vm305, %v1451, 0
    %v1458 = vsel %vm305, %v1453, 0
    %1460 = vmatprep.subr.bf16.mxu0 0
    %1461 = vmatpush1.bf16.xpose.msra.mxu0 %v1458
    %1462 = vmatprep.subr.bf16.mxu0 0
    %1463 = vmatpush1.bf16.xpose.msra.mxu0 0
    %1464 = vmatprep.subr.bf16.mxu0 0
    %1465 = vmatpush1.bf16.xpose.msra.mxu0 0
    %1466 = vmatprep.subr.bf16.mxu0 0
    %1467 = vmatpush1.bf16.xpose.msra.mxu0 0
    %1468 = vmatprep.subr.bf16.mxu0 0
    %1469 = vmatpush1.bf16.xpose.msra.mxu0 0
    %1470 = vmatprep.subr.bf16.mxu0 0
    %1471 = vmatpush1.bf16.xpose.msra.mxu0 0
    %1472 = vmatprep.subr.bf16.mxu0 0
    %1473 = vmatpush1.bf16.xpose.msra.mxu0 0
    %1474 = vmatprep.subr.bf16.mxu0 0
    %1475 = vmatpush1.bf16.xpose.msra.mxu0 0
    %1476 = vmatprep.subr.bf16.mxu0 0
    %1477 = vmatpush1.bf16.xpose.msra.mxu0 0
    %1478 = vmatprep.subr.bf16.mxu0 0
    %1479 = vmatpush1.bf16.xpose.msra.mxu0 0
    %1480 = vmatprep.subr.bf16.mxu0 0
    %1481 = vmatpush1.bf16.xpose.msra.mxu0 0
    %1482 = vmatprep.subr.bf16.mxu0 0
    %1483 = vmatpush1.bf16.xpose.msra.mxu0 0
    %1484 = vmatprep.subr.bf16.mxu0 0
    %1485 = vmatpush1.bf16.xpose.msra.mxu0 0
    %1486 = vmatprep.subr.bf16.mxu0 0
    %1487 = vmatpush1.bf16.xpose.msra.mxu0 0
    %1488 = vmatprep.subr.bf16.mxu0 0
    %1489 = vmatpush1.bf16.xpose.msra.mxu0 0
    %1490 = vmatprep.subr.bf16.mxu0 0
    %1491 = vmatpush1.bf16.xpose.msra.mxu0 0
    %1492 = vmatprep.mubr.bf16.mxu0 0
    %1493 = vmatmul.mubr.bf16.gmra.mrb[0].mxu0 %v1455
    %v1494 = vpop.f32.mrb[0].mxu0
    %v1495 = vadd.f32 %v112, %v1494
    %v1496 = vpop.f32.mrb[0].mxu0
    %v1497 = vpop.f32.mrb[0].mxu0
    %v1498 = vadd.f32 %v113, %v1497
    %v1499 = vpop.f32.mrb[0].mxu0
    %1500 = vdwg.mxu0
    %v1501 = vmul.f32 %v1495, 1.442695
    %v1502 = vpow.pop %v1501
    %v1503 = vmul.f32 %v1498, 1.442695
    %v1504 = vpow.pop %v1503
    %v1505 = vsel %vm356, %v1502, 0.0
    %1506 = vadd.xlane.f32.xlu0 %v1505
    %v1507 = vpop.xlane.xlu0 %1506
    %v1508 = vsel %vm356, %v1504, 0.0
    %1509 = vadd.xlane.f32.xlu0 %v1508
    %v1510 = vpop.xlane.xlu0 %1509
    %v1511 = vrcp.pop %v1507
    %v1512 = vrcp.pop %v1510
    %v1513 = vmul.f32 %v1502, %v1511
    %v1514 = vmul.f32 %v1504, %v1512
    %v1515 = vpack.c.bf16 %v1514, %v1513
    %1516 = vrot.lane.b32.xlu0 %v1325, 32
    %v1517 = vpop.permute.xlu0 %1516
    %v1519 = vsel %vm356, %v1515, 0
    %v1522 = vsel %vm301, %v1517, 0
    %1524 = vmatprep.subr.bf16.mxu0 0
    %1525 = vmatpush1.bf16.msra.mxu0 %v1522
    %1526 = vmatprep.subr.bf16.mxu0 0
    %1527 = vmatpush1.bf16.msra.mxu0 0
    %1528 = vmatprep.subr.bf16.mxu0 0
    %1529 = vmatpush1.bf16.msra.mxu0 0
    %1530 = vmatprep.subr.bf16.mxu0 0
    %1531 = vmatpush1.bf16.msra.mxu0 0
    %1532 = vmatprep.subr.bf16.mxu0 0
    %1533 = vmatpush1.bf16.msra.mxu0 0
    %1534 = vmatprep.subr.bf16.mxu0 0
    %1535 = vmatpush1.bf16.msra.mxu0 0
    %1536 = vmatprep.subr.bf16.mxu0 0
    %1537 = vmatpush1.bf16.msra.mxu0 0
    %1538 = vmatprep.subr.bf16.mxu0 0
    %1539 = vmatpush1.bf16.msra.mxu0 0
    %1540 = vmatprep.subr.bf16.mxu0 0
    %1541 = vmatpush1.bf16.msra.mxu0 0
    %1542 = vmatprep.subr.bf16.mxu0 0
    %1543 = vmatpush1.bf16.msra.mxu0 0
    %1544 = vmatprep.subr.bf16.mxu0 0
    %1545 = vmatpush1.bf16.msra.mxu0 0
    %1546 = vmatprep.subr.bf16.mxu0 0
    %1547 = vmatpush1.bf16.msra.mxu0 0
    %1548 = vmatprep.subr.bf16.mxu0 0
    %1549 = vmatpush1.bf16.msra.mxu0 0
    %1550 = vmatprep.subr.bf16.mxu0 0
    %1551 = vmatpush1.bf16.msra.mxu0 0
    %1552 = vmatprep.subr.bf16.mxu0 0
    %1553 = vmatpush1.bf16.msra.mxu0 0
    %1554 = vmatprep.subr.bf16.mxu0 0
    %1555 = vmatpush1.bf16.msra.mxu0 0
    %1556 = vmatprep.mubr.bf16.mxu0 0
    %1557 = vmatmul.mubr.bf16.gmra.mrb[0].mxu0 %v1519
    %v1558 = vpop.f32.mrb[0].mxu0
    %v1559 = vadd.f32 0.0, %v1558
    %v1560 = vpop.f32.mrb[0].mxu0
    %v1561 = vpop.f32.mrb[0].mxu0
    %v1562 = vadd.f32 0.0, %v1561
    %v1563 = vpop.f32.mrb[0].mxu0
    %1564 = vdwg.mxu0
    %1566 = vrot.lane.b32.xlu0 %v1562, 32
    %v1567 = vpop.permute.xlu0 %1566
    %v1569 = vsel %vm305, %v1559, %v1567
    %1571 = vrot.lane.b32.xlu0 %v1569, 64
    %v1572 = vpop.permute.xlu0 %1571
    %v1574 = vsel %vm548, %v1448, %v1572
    %v1575 = vpack.c.bf16 %v1574, %v1574
    %s1576 = scalar_lea.vmem [#allocation7], 64
    %v1577 = vld [vmem:[%s1576] sm:$0xf]
    %v1578 = vld [vmem:[%s1576 + $0x4] sm:$0xf]
    %v1579 = vld [vmem:[%s1576 + $0x8] sm:$0xf]
    %v1580 = vld [vmem:[%s1576 + $0xc] sm:$0xf]
    %v1581 = vld [vmem:[%s1576 + $0x10] sm:$0xf]
    %v1582 = vld [vmem:[%s1576 + $0x14] sm:$0xf]
    %v1583 = vld [vmem:[%s1576 + $0x18] sm:$0xf]
    %v1584 = vld [vmem:[%s1576 + $0x1c] sm:$0xf]
    %v1585 = vld [vmem:[%s1576 + $0x20] sm:$0xf]
    %v1586 = vld [vmem:[%s1576 + $0x24] sm:$0xf]
    %v1587 = vld [vmem:[%s1576 + $0x28] sm:$0xf]
    %v1588 = vld [vmem:[%s1576 + $0x2c] sm:$0xf]
    %v1589 = vld [vmem:[%s1576 + $0x30] sm:$0xf]
    %v1590 = vld [vmem:[%s1576 + $0x34] sm:$0xf]
    %v1591 = vld [vmem:[%s1576 + $0x38] sm:$0xf]
    %v1592 = vld [vmem:[%s1576 + $0x3c] sm:$0xf]
    %v1609 = vunpack.c.l.b16 %v1577
    %v1610 = vunpack.c.l.b16 %v1578
    %v1611 = vunpack.c.l.b16 %v1579
    %v1612 = vunpack.c.l.b16 %v1580
    %v1613 = vunpack.c.l.b16 %v1581
    %v1614 = vunpack.c.l.b16 %v1582
    %v1615 = vunpack.c.l.b16 %v1583
    %v1616 = vunpack.c.l.b16 %v1584
    %v1617 = vunpack.c.l.b16 %v1585
    %v1618 = vunpack.c.l.b16 %v1586
    %v1619 = vunpack.c.l.b16 %v1587
    %v1620 = vunpack.c.l.b16 %v1588
    %v1621 = vunpack.c.l.b16 %v1589
    %v1622 = vunpack.c.l.b16 %v1590
    %v1623 = vunpack.c.l.b16 %v1591
    %v1624 = vunpack.c.l.b16 %v1592
    %v1625 = vpack.c.b16 %v1610, %v1609
    %v1626 = vpack.c.b16 %v1612, %v1611
    %v1627 = vpack.c.b16 %v1614, %v1613
    %v1628 = vpack.c.b16 %v1616, %v1615
    %v1629 = vpack.c.b16 %v1618, %v1617
    %v1630 = vpack.c.b16 %v1620, %v1619
    %v1631 = vpack.c.b16 %v1622, %v1621
    %v1632 = vpack.c.b16 %v1624, %v1623
    %1641 = vmatprep.subr.bf16.mxu0 0
    %1642 = vmatpush1.bf16.msra.mxu0 %v1625
    %1643 = vmatprep.subr.bf16.mxu0 0
    %1644 = vmatpush1.bf16.msra.mxu0 %v1626
    %1645 = vmatprep.subr.bf16.mxu0 0
    %1646 = vmatpush1.bf16.msra.mxu0 %v1627
    %1647 = vmatprep.subr.bf16.mxu0 0
    %1648 = vmatpush1.bf16.msra.mxu0 %v1628
    %1649 = vmatprep.subr.bf16.mxu0 0
    %1650 = vmatpush1.bf16.msra.mxu0 %v1629
    %1651 = vmatprep.subr.bf16.mxu0 0
    %1652 = vmatpush1.bf16.msra.mxu0 %v1630
    %1653 = vmatprep.subr.bf16.mxu0 0
    %1654 = vmatpush1.bf16.msra.mxu0 %v1631
    %1655 = vmatprep.subr.bf16.mxu0 0
    %1656 = vmatpush1.bf16.msra.mxu0 %v1632
    %1657 = vmatprep.subr.bf16.mxu0 0
    %1658 = vmatpush1.bf16.msra.mxu0 0
    %1659 = vmatprep.subr.bf16.mxu0 0
    %1660 = vmatpush1.bf16.msra.mxu0 0
    %1661 = vmatprep.subr.bf16.mxu0 0
    %1662 = vmatpush1.bf16.msra.mxu0 0
    %1663 = vmatprep.subr.bf16.mxu0 0
    %1664 = vmatpush1.bf16.msra.mxu0 0
    %1665 = vmatprep.subr.bf16.mxu0 0
    %1666 = vmatpush1.bf16.msra.mxu0 0
    %1667 = vmatprep.subr.bf16.mxu0 0
    %1668 = vmatpush1.bf16.msra.mxu0 0
    %1669 = vmatprep.subr.bf16.mxu0 0
    %1670 = vmatpush1.bf16.msra.mxu0 0
    %1671 = vmatprep.subr.bf16.mxu0 0
    %1672 = vmatpush1.bf16.msra.mxu0 0
    %1673 = vmatprep.mubr.bf16.mxu0 0
    %1674 = vmatmul.mubr.bf16.gmra.mrb[0].mxu0 %v1575
    %v1675 = vpop.f32.mrb[0].mxu0
    %v1676 = vadd.f32 0.0, %v1675
    %v1677 = vpop.f32.mrb[0].mxu0
    %v1678 = vpop.f32.mrb[0].mxu0
    %v1679 = vpop.f32.mrb[0].mxu0
    %1680 = vdwg.mxu0
    %v1681 = vpack.c.bf16 %v1676, %v1676
    %v1682 = vadd.bf16 %v1134, %v1681
    %v1683 = vunpack.c.l.bf16 %v1682
    %s1684 = scalar_lea.vmem %s6, 1
    %v1685 = vld [vmem:[%s1684] sm:$0x1]
    %v1686 = vmul.f32 %v1683, %v1683
    %1687 = vadd.xlane.f32.xlu0 %v1686
    %v1688 = vpop.xlane.xlu0 %1687
    %v1689 = vmul.f32 %v1688, %v120
    %v1690 = vadd.f32 %v1689, 1e-05
    %v1691 = vrsqrt.pop %v1690
    %v1692 = vmul.f32 %v1683, %v1691
    %v1693 = vunpack.c.l.bf16 %v1685
    %v1694 = vlaneseq
    %v1695 = vshrl.u32 %v1694, 7
    %v1696 = vsub.s32 0, %v1695
    %v1697 = vrot.slane %v1693, %v1696
    %v1698 = vmul.f32 %v1692, %v1697
    %v1699 = vpack.c.bf16 %v1698, %v1698
    %s1700 = scalar_lea.vmem [#allocation8], 256
    %v1701 = vld [vmem:[%s1700] sm:$0xff]
    %v1702 = vld [vmem:[%s1700 + $0x8] sm:$0xff]
    %v1703 = vld [vmem:[%s1700 + $0x10] sm:$0xff]
    %v1704 = vld [vmem:[%s1700 + $0x18] sm:$0xff]
    %v1705 = vld [vmem:[%s1700 + $0x20] sm:$0xff]
    %v1706 = vld [vmem:[%s1700 + $0x28] sm:$0xff]
    %v1707 = vld [vmem:[%s1700 + $0x30] sm:$0xff]
    %v1708 = vld [vmem:[%s1700 + $0x38] sm:$0xff]
    %v1709 = vld [vmem:[%s1700 + $0x40] sm:$0xff]
    %v1710 = vld [vmem:[%s1700 + $0x48] sm:$0xff]
    %v1711 = vld [vmem:[%s1700 + $0x50] sm:$0xff]
    %v1712 = vld [vmem:[%s1700 + $0x58] sm:$0xff]
    %v1713 = vld [vmem:[%s1700 + $0x60] sm:$0xff]
    %v1714 = vld [vmem:[%s1700 + $0x68] sm:$0xff]
    %v1715 = vld [vmem:[%s1700 + $0x70] sm:$0xff]
    %v1716 = vld [vmem:[%s1700 + $0x78] sm:$0xff]
    %v1717 = vld [vmem:[%s1700 + $0x80] sm:$0xff]
    %v1718 = vld [vmem:[%s1700 + $0x88] sm:$0xff]
    %v1719 = vld [vmem:[%s1700 + $0x90] sm:$0xff]
    %v1720 = vld [vmem:[%s1700 + $0x98] sm:$0xff]
    %v1721 = vld [vmem:[%s1700 + $0xa0] sm:$0xff]
    %v1722 = vld [vmem:[%s1700 + $0xa8] sm:$0xff]
    %v1723 = vld [vmem:[%s1700 + $0xb0] sm:$0xff]
    %v1724 = vld [vmem:[%s1700 + $0xb8] sm:$0xff]
    %v1725 = vld [vmem:[%s1700 + $0xc0] sm:$0xff]
    %v1726 = vld [vmem:[%s1700 + $0xc8] sm:$0xff]
    %v1727 = vld [vmem:[%s1700 + $0xd0] sm:$0xff]
    %v1728 = vld [vmem:[%s1700 + $0xd8] sm:$0xff]
    %v1729 = vld [vmem:[%s1700 + $0xe0] sm:$0xff]
    %v1730 = vld [vmem:[%s1700 + $0xe8] sm:$0xff]
    %v1731 = vld [vmem:[%s1700 + $0xf0] sm:$0xff]
    %v1732 = vld [vmem:[%s1700 + $0xf8] sm:$0xff]
    %v1765 = vunpack.c.l.b16 %v1701
    %v1766 = vunpack.c.h.b16 %v1701
    %v1767 = vunpack.c.l.b16 %v1702
    %v1768 = vunpack.c.h.b16 %v1702
    %v1769 = vunpack.c.l.b16 %v1703
    %v1770 = vunpack.c.h.b16 %v1703
    %v1771 = vunpack.c.l.b16 %v1704
    %v1772 = vunpack.c.h.b16 %v1704
    %v1773 = vunpack.c.l.b16 %v1705
    %v1774 = vunpack.c.h.b16 %v1705
    %v1775 = vunpack.c.l.b16 %v1706
    %v1776 = vunpack.c.h.b16 %v1706
    %v1777 = vunpack.c.l.b16 %v1707
    %v1778 = vunpack.c.h.b16 %v1707
    %v1779 = vunpack.c.l.b16 %v1708
    %v1780 = vunpack.c.h.b16 %v1708
    %v1781 = vunpack.c.l.b16 %v1709
    %v1782 = vunpack.c.h.b16 %v1709
    %v1783 = vunpack.c.l.b16 %v1710
    %v1784 = vunpack.c.h.b16 %v1710
    %v1785 = vunpack.c.l.b16 %v1711
    %v1786 = vunpack.c.h.b16 %v1711
    %v1787 = vunpack.c.l.b16 %v1712
    %v1788 = vunpack.c.h.b16 %v1712
    %v1789 = vunpack.c.l.b16 %v1713
    %v1790 = vunpack.c.h.b16 %v1713
    %v1791 = vunpack.c.l.b16 %v1714
    %v1792 = vunpack.c.h.b16 %v1714
    %v1793 = vunpack.c.l.b16 %v1715
    %v1794 = vunpack.c.h.b16 %v1715
    %v1795 = vunpack.c.l.b16 %v1716
    %v1796 = vunpack.c.h.b16 %v1716
    %v1797 = vunpack.c.l.b16 %v1717
    %v1798 = vunpack.c.h.b16 %v1717
    %v1799 = vunpack.c.l.b16 %v1718
    %v1800 = vunpack.c.h.b16 %v1718
    %v1801 = vunpack.c.l.b16 %v1719
    %v1802 = vunpack.c.h.b16 %v1719
    %v1803 = vunpack.c.l.b16 %v1720
    %v1804 = vunpack.c.h.b16 %v1720
    %v1805 = vunpack.c.l.b16 %v1721
    %v1806 = vunpack.c.h.b16 %v1721
    %v1807 = vunpack.c.l.b16 %v1722
    %v1808 = vunpack.c.h.b16 %v1722
    %v1809 = vunpack.c.l.b16 %v1723
    %v1810 = vunpack.c.h.b16 %v1723
    %v1811 = vunpack.c.l.b16 %v1724
    %v1812 = vunpack.c.h.b16 %v1724
    %v1813 = vunpack.c.l.b16 %v1725
    %v1814 = vunpack.c.h.b16 %v1725
    %v1815 = vunpack.c.l.b16 %v1726
    %v1816 = vunpack.c.h.b16 %v1726
    %v1817 = vunpack.c.l.b16 %v1727
    %v1818 = vunpack.c.h.b16 %v1727
    %v1819 = vunpack.c.l.b16 %v1728
    %v1820 = vunpack.c.h.b16 %v1728
    %v1821 = vunpack.c.l.b16 %v1729
    %v1822 = vunpack.c.h.b16 %v1729
    %v1823 = vunpack.c.l.b16 %v1730
    %v1824 = vunpack.c.h.b16 %v1730
    %v1825 = vunpack.c.l.b16 %v1731
    %v1826 = vunpack.c.h.b16 %v1731
    %v1827 = vunpack.c.l.b16 %v1732
    %v1828 = vunpack.c.h.b16 %v1732
    %v1829 = vpack.c.b16 %v1769, %v1765
    %v1830 = vpack.c.b16 %v1770, %v1766
    %v1831 = vpack.c.b16 %v1771, %v1767
    %v1832 = vpack.c.b16 %v1772, %v1768
    %v1833 = vpack.c.b16 %v1777, %v1773
    %v1834 = vpack.c.b16 %v1778, %v1774
    %v1835 = vpack.c.b16 %v1779, %v1775
    %v1836 = vpack.c.b16 %v1780, %v1776
    %v1837 = vpack.c.b16 %v1785, %v1781
    %v1838 = vpack.c.b16 %v1786, %v1782
    %v1839 = vpack.c.b16 %v1787, %v1783
    %v1840 = vpack.c.b16 %v1788, %v1784
    %v1841 = vpack.c.b16 %v1793, %v1789
    %v1842 = vpack.c.b16 %v1794, %v1790
    %v1843 = vpack.c.b16 %v1795, %v1791
    %v1844 = vpack.c.b16 %v1796, %v1792
    %v1845 = vpack.c.b16 %v1801, %v1797
    %v1846 = vpack.c.b16 %v1802, %v1798
    %v1847 = vpack.c.b16 %v1803, %v1799
    %v1848 = vpack.c.b16 %v1804, %v1800
    %v1849 = vpack.c.b16 %v1809, %v1805
    %v1850 = vpack.c.b16 %v1810, %v1806
    %v1851 = vpack.c.b16 %v1811, %v1807
    %v1852 = vpack.c.b16 %v1812, %v1808
    %v1853 = vpack.c.b16 %v1817, %v1813
    %v1854 = vpack.c.b16 %v1818, %v1814
    %v1855 = vpack.c.b16 %v1819, %v1815
    %v1856 = vpack.c.b16 %v1820, %v1816
    %v1857 = vpack.c.b16 %v1825, %v1821
    %v1858 = vpack.c.b16 %v1826, %v1822
    %v1859 = vpack.c.b16 %v1827, %v1823
    %v1860 = vpack.c.b16 %v1828, %v1824
    %1893 = vmatprep.subr.bf16.mxu0 %v1830
    %1894 = vmatpush1.bf16.msra.mxu0 %v1829
    %1895 = vmatprep.subr.bf16.mxu0 %v1834
    %1896 = vmatpush1.bf16.msra.mxu0 %v1833
    %1897 = vmatprep.subr.bf16.mxu0 %v1838
    %1898 = vmatpush1.bf16.msra.mxu0 %v1837
    %1899 = vmatprep.subr.bf16.mxu0 %v1842
    %1900 = vmatpush1.bf16.msra.mxu0 %v1841
    %1901 = vmatprep.subr.bf16.mxu0 %v1846
    %1902 = vmatpush1.bf16.msra.mxu0 %v1845
    %1903 = vmatprep.subr.bf16.mxu0 %v1850
    %1904 = vmatpush1.bf16.msra.mxu0 %v1849
    %1905 = vmatprep.subr.bf16.mxu0 %v1854
    %1906 = vmatpush1.bf16.msra.mxu0 %v1853
    %1907 = vmatprep.subr.bf16.mxu0 %v1858
    %1908 = vmatpush1.bf16.msra.mxu0 %v1857
    %1909 = vmatprep.subr.bf16.mxu0 0
    %1910 = vmatpush1.bf16.msra.mxu0 0
    %1911 = vmatprep.subr.bf16.mxu0 0
    %1912 = vmatpush1.bf16.msra.mxu0 0
    %1913 = vmatprep.subr.bf16.mxu0 0
    %1914 = vmatpush1.bf16.msra.mxu0 0
    %1915 = vmatprep.subr.bf16.mxu0 0
    %1916 = vmatpush1.bf16.msra.mxu0 0
    %1917 = vmatprep.subr.bf16.mxu0 0
    %1918 = vmatpush1.bf16.msra.mxu0 0
    %1919 = vmatprep.subr.bf16.mxu0 0
    %1920 = vmatpush1.bf16.msra.mxu0 0
    %1921 = vmatprep.subr.bf16.mxu0 0
    %1922 = vmatpush1.bf16.msra.mxu0 0
    %1923 = vmatprep.subr.bf16.mxu0 0
    %1924 = vmatpush1.bf16.msra.mxu0 0
    %1925 = vmatprep.mubr.bf16.mxu0 0
    %1926 = vmatmul.mubr.bf16.gmra.mrb[0].mxu0 %v1699
    %v1927 = vpop.f32.mrb[0].mxu0
    %v1928 = vadd.f32 0.0, %v1927
    %v1929 = vpop.f32.mrb[0].mxu0
    %v1930 = vadd.f32 0.0, %v1929
    %v1931 = vpop.f32.mrb[0].mxu0
    %v1932 = vpop.f32.mrb[0].mxu0
    %1933 = vdwg.mxu0
    %1934 = vmatprep.subr.bf16.mxu0 %v1832
    %1935 = vmatpush1.bf16.msra.mxu0 %v1831
    %1936 = vmatprep.subr.bf16.mxu0 %v1836
    %1937 = vmatpush1.bf16.msra.mxu0 %v1835
    %1938 = vmatprep.subr.bf16.mxu0 %v1840
    %1939 = vmatpush1.bf16.msra.mxu0 %v1839
    %1940 = vmatprep.subr.bf16.mxu0 %v1844
    %1941 = vmatpush1.bf16.msra.mxu0 %v1843
    %1942 = vmatprep.subr.bf16.mxu0 %v1848
    %1943 = vmatpush1.bf16.msra.mxu0 %v1847
    %1944 = vmatprep.subr.bf16.mxu0 %v1852
    %1945 = vmatpush1.bf16.msra.mxu0 %v1851
    %1946 = vmatprep.subr.bf16.mxu0 %v1856
    %1947 = vmatpush1.bf16.msra.mxu0 %v1855
    %1948 = vmatprep.subr.bf16.mxu0 %v1860
    %1949 = vmatpush1.bf16.msra.mxu0 %v1859
    %1950 = vmatprep.subr.bf16.mxu0 0
    %1951 = vmatpush1.bf16.msra.mxu0 0
    %1952 = vmatprep.subr.bf16.mxu0 0
    %1953 = vmatpush1.bf16.msra.mxu0 0
    %1954 = vmatprep.subr.bf16.mxu0 0
    %1955 = vmatpush1.bf16.msra.mxu0 0
    %1956 = vmatprep.subr.bf16.mxu0 0
    %1957 = vmatpush1.bf16.msra.mxu0 0
    %1958 = vmatprep.subr.bf16.mxu0 0
    %1959 = vmatpush1.bf16.msra.mxu0 0
    %1960 = vmatprep.subr.bf16.mxu0 0
    %1961 = vmatpush1.bf16.msra.mxu0 0
    %1962 = vmatprep.subr.bf16.mxu0 0
    %1963 = vmatpush1.bf16.msra.mxu0 0
    %1964 = vmatprep.subr.bf16.mxu0 0
    %1965 = vmatpush1.bf16.msra.mxu0 0
    %1966 = vmatprep.mubr.bf16.mxu0 0
    %1967 = vmatmul.mubr.bf16.gmra.mrb[0].mxu0 %v1699
    %v1968 = vpop.f32.mrb[0].mxu0
    %v1969 = vadd.f32 0.0, %v1968
    %v1970 = vpop.f32.mrb[0].mxu0
    %v1971 = vadd.f32 0.0, %v1970
    %v1972 = vpop.f32.mrb[0].mxu0
    %v1973 = vpop.f32.mrb[0].mxu0
    %1974 = vdwg.mxu0
    %v1975 = vxor.u32 %v1928, 2147483648
    %v1976 = vxor.u32 %v1930, 2147483648
    %v1977 = vmul.f32 %v1975, 1.442695
    %v1978 = vpow.pop %v1977
    %v1979 = vmul.f32 %v1976, 1.442695
    %v1980 = vpow.pop %v1979
    %v1981 = vadd.f32 %v1978, 1.0
    %v1982 = vadd.f32 %v1980, 1.0
    %v1983 = vrcp.pop %v1981
    %v1984 = vmul.f32 1.0, %v1983
    %v1985 = vrcp.pop %v1982
    %v1986 = vmul.f32 1.0, %v1985
    %v1987 = vmul.f32 %v1928, %v1984
    %v1988 = vmul.f32 %v1930, %v1986
    %v1989 = vmul.f32 %v1987, %v1969
    %v1990 = vmul.f32 %v1988, %v1971
    %v1991 = vpack.c.bf16 %v1989, %v1989
    %v1992 = vpack.c.bf16 %v1990, %v1990
    %s1993 = scalar_lea.vmem [#allocation10], 128
    %v1994 = vld [vmem:[%s1993] sm:$0xf]
    %v1995 = vld [vmem:[%s1993 + $0x4] sm:$0xf]
    %v1996 = vld [vmem:[%s1993 + $0x8] sm:$0xf]
    %v1997 = vld [vmem:[%s1993 + $0xc] sm:$0xf]
    %v1998 = vld [vmem:[%s1993 + $0x10] sm:$0xf]
    %v1999 = vld [vmem:[%s1993 + $0x14] sm:$0xf]
    %v2000 = vld [vmem:[%s1993 + $0x18] sm:$0xf]
    %v2001 = vld [vmem:[%s1993 + $0x1c] sm:$0xf]
    %v2002 = vld [vmem:[%s1993 + $0x20] sm:$0xf]
    %v2003 = vld [vmem:[%s1993 + $0x24] sm:$0xf]
    %v2004 = vld [vmem:[%s1993 + $0x28] sm:$0xf]
    %v2005 = vld [vmem:[%s1993 + $0x2c] sm:$0xf]
    %v2006 = vld [vmem:[%s1993 + $0x30] sm:$0xf]
    %v2007 = vld [vmem:[%s1993 + $0x34] sm:$0xf]
    %v2008 = vld [vmem:[%s1993 + $0x38] sm:$0xf]
    %v2009 = vld [vmem:[%s1993 + $0x3c] sm:$0xf]
    %v2010 = vld [vmem:[%s1993 + $0x40] sm:$0xf]
    %v2011 = vld [vmem:[%s1993 + $0x44] sm:$0xf]
    %v2012 = vld [vmem:[%s1993 + $0x48] sm:$0xf]
    %v2013 = vld [vmem:[%s1993 + $0x4c] sm:$0xf]
    %v2014 = vld [vmem:[%s1993 + $0x50] sm:$0xf]
    %v2015 = vld [vmem:[%s1993 + $0x54] sm:$0xf]
    %v2016 = vld [vmem:[%s1993 + $0x58] sm:$0xf]
    %v2017 = vld [vmem:[%s1993 + $0x5c] sm:$0xf]
    %v2018 = vld [vmem:[%s1993 + $0x60] sm:$0xf]
    %v2019 = vld [vmem:[%s1993 + $0x64] sm:$0xf]
    %v2020 = vld [vmem:[%s1993 + $0x68] sm:$0xf]
    %v2021 = vld [vmem:[%s1993 + $0x6c] sm:$0xf]
    %v2022 = vld [vmem:[%s1993 + $0x70] sm:$0xf]
    %v2023 = vld [vmem:[%s1993 + $0x74] sm:$0xf]
    %v2024 = vld [vmem:[%s1993 + $0x78] sm:$0xf]
    %v2025 = vld [vmem:[%s1993 + $0x7c] sm:$0xf]
    %v2058 = vunpack.c.l.b16 %v1994
    %v2059 = vunpack.c.l.b16 %v1995
    %v2060 = vunpack.c.l.b16 %v1996
    %v2061 = vunpack.c.l.b16 %v1997
    %v2062 = vunpack.c.l.b16 %v1998
    %v2063 = vunpack.c.l.b16 %v1999
    %v2064 = vunpack.c.l.b16 %v2000
    %v2065 = vunpack.c.l.b16 %v2001
    %v2066 = vunpack.c.l.b16 %v2002
    %v2067 = vunpack.c.l.b16 %v2003
    %v2068 = vunpack.c.l.b16 %v2004
    %v2069 = vunpack.c.l.b16 %v2005
    %v2070 = vunpack.c.l.b16 %v2006
    %v2071 = vunpack.c.l.b16 %v2007
    %v2072 = vunpack.c.l.b16 %v2008
    %v2073 = vunpack.c.l.b16 %v2009
    %v2074 = vunpack.c.l.b16 %v2010
    %v2075 = vunpack.c.l.b16 %v2011
    %v2076 = vunpack.c.l.b16 %v2012
    %v2077 = vunpack.c.l.b16 %v2013
    %v2078 = vunpack.c.l.b16 %v2014
    %v2079 = vunpack.c.l.b16 %v2015
    %v2080 = vunpack.c.l.b16 %v2016
    %v2081 = vunpack.c.l.b16 %v2017
    %v2082 = vunpack.c.l.b16 %v2018
    %v2083 = vunpack.c.l.b16 %v2019
    %v2084 = vunpack.c.l.b16 %v2020
    %v2085 = vunpack.c.l.b16 %v2021
    %v2086 = vunpack.c.l.b16 %v2022
    %v2087 = vunpack.c.l.b16 %v2023
    %v2088 = vunpack.c.l.b16 %v2024
    %v2089 = vunpack.c.l.b16 %v2025
    %v2090 = vpack.c.b16 %v2059, %v2058
    %v2091 = vpack.c.b16 %v2061, %v2060
    %v2092 = vpack.c.b16 %v2063, %v2062
    %v2093 = vpack.c.b16 %v2065, %v2064
    %v2094 = vpack.c.b16 %v2067, %v2066
    %v2095 = vpack.c.b16 %v2069, %v2068
    %v2096 = vpack.c.b16 %v2071, %v2070
    %v2097 = vpack.c.b16 %v2073, %v2072
    %v2098 = vpack.c.b16 %v2075, %v2074
    %v2099 = vpack.c.b16 %v2077, %v2076
    %v2100 = vpack.c.b16 %v2079, %v2078
    %v2101 = vpack.c.b16 %v2081, %v2080
    %v2102 = vpack.c.b16 %v2083, %v2082
    %v2103 = vpack.c.b16 %v2085, %v2084
    %v2104 = vpack.c.b16 %v2087, %v2086
    %v2105 = vpack.c.b16 %v2089, %v2088
    %2122 = vmatprep.subr.bf16.mxu0 0
    %2123 = vmatpush1.bf16.msra.mxu0 %v2090
    %2124 = vmatprep.subr.bf16.mxu0 0
    %2125 = vmatpush1.bf16.msra.mxu0 %v2091
    %2126 = vmatprep.subr.bf16.mxu0 0
    %2127 = vmatpush1.bf16.msra.mxu0 %v2092
    %2128 = vmatprep.subr.bf16.mxu0 0
    %2129 = vmatpush1.bf16.msra.mxu0 %v2093
    %2130 = vmatprep.subr.bf16.mxu0 0
    %2131 = vmatpush1.bf16.msra.mxu0 %v2094
    %2132 = vmatprep.subr.bf16.mxu0 0
    %2133 = vmatpush1.bf16.msra.mxu0 %v2095
    %2134 = vmatprep.subr.bf16.mxu0 0
    %2135 = vmatpush1.bf16.msra.mxu0 %v2096
    %2136 = vmatprep.subr.bf16.mxu0 0
    %2137 = vmatpush1.bf16.msra.mxu0 %v2097
    %2138 = vmatprep.subr.bf16.mxu0 0
    %2139 = vmatpush1.bf16.msra.mxu0 %v2098
    %2140 = vmatprep.subr.bf16.mxu0 0
    %2141 = vmatpush1.bf16.msra.mxu0 %v2099
    %2142 = vmatprep.subr.bf16.mxu0 0
    %2143 = vmatpush1.bf16.msra.mxu0 %v2100
    %2144 = vmatprep.subr.bf16.mxu0 0
    %2145 = vmatpush1.bf16.msra.mxu0 %v2101
    %2146 = vmatprep.subr.bf16.mxu0 0
    %2147 = vmatpush1.bf16.msra.mxu0 %v2102
    %2148 = vmatprep.subr.bf16.mxu0 0
    %2149 = vmatpush1.bf16.msra.mxu0 %v2103
    %2150 = vmatprep.subr.bf16.mxu0 0
    %2151 = vmatpush1.bf16.msra.mxu0 %v2104
    %2152 = vmatprep.subr.bf16.mxu0 0
    %2153 = vmatpush1.bf16.msra.mxu0 %v2105
    %2154 = vmatprep.mubr.bf16.mxu0 %v1992
    %2155 = vmatmul.mubr.bf16.gmra.mrb[0].mxu0 %v1991
    %v2156 = vpop.f32.mrb[0].mxu0
    %v2157 = vadd.f32 0.0, %v2156
    %v2158 = vpop.f32.mrb[0].mxu0
    %v2159 = vpop.f32.mrb[0].mxu0
    %v2160 = vpop.f32.mrb[0].mxu0
    %2161 = vdwg.mxu0
    %v2162 = vpack.c.bf16 %v2157, %v2157
    %v2163 = vadd.bf16 %v1682, %v2162
    %v2167 = vunpack.c.l.b16 %v1681
    %v2168 = vunpack.c.l.b16 %v2162
    %v2169 = vunpack.c.l.b16 %v2163
    %v2170 = vpack.c.b16 %v2168, %v2167
    %v2171 = vpack.c.b16 %v2169, %v2169
    %s2174 = scalar_lea.vmem [#allocation11], 12
    %2175 = vst [vmem:[%s2174] sm:$0xff] %v2170
    %2176 = vst [vmem:[%s2174 + $0x8] sm:$0xf] %v2171
    // Predicated region
    $region66: #{llama_forward_stack.1} parent=1 // pred_check
      _
    $region67: #{llama_forward_stack.1} parent=1 // pred_check_branch
      %2178 = sbr.rel (0) target = $region69
    $region68: #{llama_forward_stack.1} parent=1 // pred_region
      %s2180 = ssub.s32 384, 384
      %2181 = vsyncadd [#allocation4], %s2180
      %s2182 = sshll.u32 [#allocation11], 4
      %s2183 = int_to_ptr.vmem [resolvable:$true] %s2182
      %2188 = dma.vmem_to_hbm [thread:$0]  %s2183, 384, %s11, [#allocation4], 192, 192, 12
    $region69: #{llama_forward_stack.1} parent=1 // pred_fallthru
      _
    // Predicated region
    $region70: #{llama_forward_stack.1} parent=1 // pred_check
      _
    $region71: #{llama_forward_stack.1} parent=1 // pred_check_branch
      %2190 = sbr.rel (0) target = $region73
    $region72: #{llama_forward_stack.1} parent=1 // pred_region
      %2191 = dma.done [#allocation4], 384
    $region73: #{llama_forward_stack.1} parent=1 // pred_fallthru
      _
    %2192 = vsyncpa [#allocation3], 1
    %2193 = vsyncpa [#allocation6], 1
    %2194 = vsyncpa [#allocation9], 1
    %2195 = vsyncpa [#allocation4], 1

</llo_original>
